<compile_context>
chip_gen: v5e
topology: v5e:2x2
jax: 0.10.0
libtpu: 0.0.40
codegen_flags: <defaults>
</compile_context>

<pallas_src>
import math

import jax
import jax.numpy as jnp
from jax.experimental import pallas as pl
from jax.experimental.pallas import tpu as pltpu

HIDDEN = 256          # MLP hidden width (fixed by the module spec)
BN_EPS = 1e-5
LANE = 128            # TPU lane width
SLAB_W = 256          # column width of both packed parameter slabs (== HIDDEN == 2*LANE)

# Row offsets of each weight inside the packed bf16 weight slab.  All offsets and
# extents are multiples of 16, so static views are (16,128)-tile aligned for bf16.
_W1_OFF = 0                     # encoder L1: (LANE, 256), packed K over [x | ctx]
_W2_OFF = _W1_OFF + LANE        # 128: encoder L2: (256, 256)
_W3_OFF = _W2_OFF + HIDDEN      # 384: encoder head: (256, 2*LANE)  mu cols [0,LANE), logvar [LANE,2*LANE)
_V1_OFF = _W3_OFF + HIDDEN      # 640: decoder L1: (LANE, 256), packed K over [z | ctx]
_V2_OFF = _V1_OFF + LANE        # 768: decoder L2: (256, 256)
_V3_OFF = _V2_OFF + HIDDEN      # 1024: decoder head: (256, 256) (only first dpad cols used)
_W_ROWS = _V3_OFF + HIDDEN      # 1280

# Row indices inside the packed f32 vector slab (10, 256).
_B1, _G1, _BE1, _B2, _G2, _BE2, _B3, _C1, _C2, _C3 = range(10)
_V_ROWS = 10


def _vae_kernel(xc_ref, epsctx_ref, w_ref, vec_ref, xhat_ref, kld_ref):
    f32 = jnp.float32
    bf16 = jnp.bfloat16
    B = xc_ref.shape[0]
    dpad = xhat_ref.shape[1]

    # ---- static, tile-aligned views into the packed parameter slabs ----
    w1 = w_ref[_W1_OFF:_W2_OFF, :]
    w2 = w_ref[_W2_OFF:_W3_OFF, :]
    w3 = w_ref[_W3_OFF:_V1_OFF, :]
    v1 = w_ref[_V1_OFF:_V2_OFF, :]
    v2 = w_ref[_V2_OFF:_V3_OFF, :]
    v3 = w_ref[_V3_OFF:_W_ROWS, 0:dpad]

    b1 = vec_ref[_B1:_B1 + 1, :]
    g1 = vec_ref[_G1:_G1 + 1, :]
    be1 = vec_ref[_BE1:_BE1 + 1, :]
    b2 = vec_ref[_B2:_B2 + 1, :]
    g2 = vec_ref[_G2:_G2 + 1, :]
    be2 = vec_ref[_BE2:_BE2 + 1, :]
    b3 = vec_ref[_B3:_B3 + 1, :]
    c1 = vec_ref[_C1:_C1 + 1, :]
    c2 = vec_ref[_C2:_C2 + 1, :]
    c3 = vec_ref[_C3:_C3 + 1, 0:dpad]

    def bn_relu(h, g, be):
        # Training-mode BatchNorm1d (batch stats, biased var, eps=1e-5).
        # Two-pass variance mean((h-m)^2): stabler than E[x^2]-E[x]^2.
        m = jnp.mean(h, axis=0, keepdims=True)
        d = h - m
        var = jnp.mean(d * d, axis=0, keepdims=True)
        h = g * d * jax.lax.rsqrt(var + BN_EPS) + be
        return jnp.maximum(h, 0.0)

    # ---- encoder: Linear + BN + ReLU (x2), then fused mu/logvar head ----
    h = jnp.dot(xc_ref[...].astype(bf16), w1, preferred_element_type=f32) + b1
    h = bn_relu(h, g1, be1)
    h = jnp.dot(h.astype(bf16), w2, preferred_element_type=f32) + b2
    h = bn_relu(h, g2, be2)
    head = jnp.dot(h.astype(bf16), w3, preferred_element_type=f32) + b3
    mu = head[:, :LANE]      # lane-aligned 128-wide slices: zero cost
    logvar = head[:, LANE:]

    # ---- reparameterization (fused with decoder-input packing) ----
    # epsctx has eps in lanes [0, latent_dim) and context in lanes
    # [latent_dim, latent_dim + cond_dim).  Padded lanes of mu/logvar are exactly
    # zero => std == 1 there, so this single FMA yields the packed [z | context]
    # tile that decoder layer 1 consumes directly.
    std = jnp.exp(0.5 * logvar)
    zc = mu + epsctx_ref[...] * std

    # ---- KLD (uses logvar directly; padded latent lanes contribute exactly 0) ----
    terms = 1.0 + logvar - mu * mu - std * std
    kld_ref[0, 0] = (-0.5 / B) * jnp.sum(terms)

    # ---- decoder: Linear + ReLU (x2) + Linear (no BN) ----
    d = jnp.dot(zc.astype(bf16), v1, preferred_element_type=f32) + c1
    d = jnp.maximum(d, 0.0)
    d = jnp.dot(d.astype(bf16), v2, preferred_element_type=f32) + c2
    d = jnp.maximum(d, 0.0)
    xhat_ref[...] = jnp.dot(d.astype(bf16), v3, preferred_element_type=f32) + c3


def vae_forward(x, context, eps, params):
    """Whole VAE forward in one gridless Pallas call (everything fits VMEM).

    TODO(synk): if called repeatedly, fold multiple forward passes into the batch
    axis of a single pallas_call; at realistic batch sizes add a batch grid axis
    (row tiles, resident weights, dimension_semantics=("parallel",) for v7x's 2 TCs,
    vmem_limit_bytes sized for 64 MiB VMEM) plus a two-pass global BN-stats scheme,
    since training-mode BN couples all rows.
    """
    w_slab, vec_slab = params
    B, data_dim = x.shape
    cond_dim = context.shape[1]
    latent_dim = eps.shape[1]
    assert data_dim + cond_dim <= LANE and latent_dim + cond_dim <= LANE
    dpad = LANE

    # Packed, lane-dense 128-wide input tiles (padding lanes are zero).
    xc = jnp.zeros((B, LANE), jnp.float32)
    xc = xc.at[:, :data_dim].set(x)
    xc = xc.at[:, data_dim:data_dim + cond_dim].set(context)   # cat([x, context], -1)
    epsctx = jnp.zeros((B, LANE), jnp.float32)
    epsctx = epsctx.at[:, :latent_dim].set(eps)
    epsctx = epsctx.at[:, latent_dim:latent_dim + cond_dim].set(context)

    cost = pl.CostEstimate(
        flops=2 * B * _W_ROWS * SLAB_W,
        transcendentals=B * LANE + 2 * HIDDEN,
        bytes_accessed=(xc.size + epsctx.size) * 4 + w_slab.size * 2
        + vec_slab.size * 4 + B * dpad * 4 + 4)

    x_hat_pad, kld = pl.pallas_call(
        _vae_kernel,
        out_shape=(jax.ShapeDtypeStruct((B, dpad), jnp.float32),
                   jax.ShapeDtypeStruct((1, 1), jnp.float32)),
        in_specs=[pl.BlockSpec(memory_space=pltpu.MemorySpace.VMEM)] * 4,
        out_specs=(pl.BlockSpec(memory_space=pltpu.MemorySpace.VMEM),
                   pl.BlockSpec(memory_space=pltpu.MemorySpace.SMEM)),
        cost_estimate=cost,
    )(xc, epsctx, w_slab, vec_slab)

    return x_hat_pad[:, :data_dim], kld[0, 0]


def init_params(key, data_dim, condition_dim, latent_dim):
    """PyTorch-Linear-style uniform(±1/sqrt(fan_in)) init, packed into two slabs.

    Weight matrices are zero-padded on narrow feature axes, row-stacked into a
    single (1280, 256) bf16 slab (single-pass MXU operands, f32 accumulation
    in-kernel); the 10 bias / BN vectors are row-stacked into one (10, 256) f32
    slab.  bf16 operands make the 256x256 layers differ from float32 PyTorch at
    ~1e-2 relative level -- acceptable for a VAE forward pass.
    """
    assert data_dim + condition_dim <= LANE and latent_dim + condition_dim <= LANE
    ks = jax.random.split(key, 6)

    def lin(k, fan_in, fan_out):
        bound = 1.0 / math.sqrt(fan_in)
        kw, kb = jax.random.split(k)
        w = jax.random.uniform(kw, (fan_in, fan_out), jnp.float32, -bound, bound)
        b = jax.random.uniform(kb, (fan_out,), jnp.float32, -bound, bound)
        return w, b

    w1, b1 = lin(ks[0], data_dim + condition_dim, HIDDEN)
    w2, b2 = lin(ks[1], HIDDEN, HIDDEN)
    w3, b3 = lin(ks[2], HIDDEN, 2 * latent_dim)
    v1, c1 = lin(ks[3], latent_dim + condition_dim, HIDDEN)
    v2, c2 = lin(ks[4], HIDDEN, HIDDEN)
    v3, c3 = lin(ks[5], HIDDEN, data_dim)

    dpad = LANE

    # Encoder L1: packed K over [x | ctx] (matches the packed xc tile layout).
    w1p = jnp.zeros((LANE, HIDDEN), jnp.float32).at[:data_dim + condition_dim].set(w1)
    # Encoder head: mu in lanes [0, latent_dim), logvar in lanes [LANE, LANE+latent_dim).
    w3p = jnp.zeros((HIDDEN, 2 * LANE), jnp.float32)
    w3p = w3p.at[:, :latent_dim].set(w3[:, :latent_dim])
    w3p = w3p.at[:, LANE:LANE + latent_dim].set(w3[:, latent_dim:])
    b3p = jnp.zeros((2 * LANE,), jnp.float32)
    b3p = b3p.at[:latent_dim].set(b3[:latent_dim])
    b3p = b3p.at[LANE:LANE + latent_dim].set(b3[latent_dim:])
    # Decoder L1: packed K over [z | ctx] (matches the fused zc tile layout).
    v1p = jnp.zeros((LANE, HIDDEN), jnp.float32).at[:latent_dim + condition_dim].set(v1)
    # Decoder head: lane-padded output columns (padded to slab width; sliced in-kernel).
    v3p = jnp.zeros((HIDDEN, SLAB_W), jnp.float32).at[:, :data_dim].set(v3)
    c3p = jnp.zeros((SLAB_W,), jnp.float32).at[:data_dim].set(c3)

    # Single bf16 weight slab (row layout matches the _*_OFF constants).
    w_slab = jnp.concatenate([w1p, w2, w3p, v1p, v2, v3p], axis=0).astype(jnp.bfloat16)
    assert w_slab.shape == (_W_ROWS, SLAB_W)

    # Single f32 bias / BN-parameter slab.  BatchNorm1d default init:
    # weight=1, bias=0 (running stats unused: training mode).
    vec_slab = jnp.zeros((_V_ROWS, SLAB_W), jnp.float32)
    vec_slab = vec_slab.at[_B1].set(b1)
    vec_slab = vec_slab.at[_G1].set(jnp.ones((HIDDEN,), jnp.float32))
    vec_slab = vec_slab.at[_B2].set(b2)
    vec_slab = vec_slab.at[_G2].set(jnp.ones((HIDDEN,), jnp.float32))
    vec_slab = vec_slab.at[_B3].set(b3p)
    vec_slab = vec_slab.at[_C1].set(c1)
    vec_slab = vec_slab.at[_C2].set(c2)
    vec_slab = vec_slab.at[_C3].set(c3p)
    # (_BE1, _BE2 rows stay zero = BN bias default.)

    return (w_slab, vec_slab)


if __name__ == "__main__":
    data_dim, condition_dim, latent_dim, batch = 16, 8, 4, 8

    key = jax.random.PRNGKey(0)
    kx, kc, ke, kp = jax.random.split(key, 4)
    x = jax.random.normal(kx, (batch, data_dim), jnp.float32)
    context = jax.random.normal(kc, (batch, condition_dim), jnp.float32)
    # TODO(synk): torch.randn_like's RNG stream cannot be reproduced; eps is drawn
    # deterministically with jax.random and passed into the kernel.
    eps = jax.random.normal(ke, (batch, latent_dim), jnp.float32)

    params = init_params(kp, data_dim, condition_dim, latent_dim)

    x_hat, kld = vae_forward(x, context, eps, params)
    jax.block_until_ready((x_hat, kld))

    assert x_hat.shape == (batch, data_dim) and x_hat.dtype == jnp.float32
    assert kld.shape == () and kld.dtype == jnp.float32
    assert bool(jnp.isfinite(x_hat).all()) and bool(jnp.isfinite(kld))
    print("KERNEL_OK")
</pallas_src>

<mosaic_0001>
module attributes {stable_mosaic.version = 11 : i64} {
  func.func @_vae_kernel(%arg0: memref<8x128xf32, #tpu.memory_space<vmem>>, %arg1: memref<8x128xf32, #tpu.memory_space<vmem>>, %arg2: memref<1280x256xbf16, #tpu.memory_space<vmem>>, %arg3: memref<10x256xf32, #tpu.memory_space<vmem>>, %arg4: memref<8x128xf32, #tpu.memory_space<vmem>>, %arg5: memref<1x1xf32, #tpu.memory_space<smem>>) attributes {dimension_semantics = [], scalar_prefetch = 0 : i64, scratch_operands = 0 : i64, tpu.core_type = #tpu.core_type<tc>} {
    %c0 = arith.constant 0 : index
    %c0_0 = arith.constant 0 : index
    %0 = vector.load %arg2[%c0, %c0_0] : memref<1280x256xbf16, #tpu.memory_space<vmem>>, vector<128x256xbf16>
    %c128 = arith.constant 128 : index
    %c0_1 = arith.constant 0 : index
    %1 = vector.load %arg2[%c128, %c0_1] : memref<1280x256xbf16, #tpu.memory_space<vmem>>, vector<256x256xbf16>
    %c384 = arith.constant 384 : index
    %c0_2 = arith.constant 0 : index
    %2 = vector.load %arg2[%c384, %c0_2] : memref<1280x256xbf16, #tpu.memory_space<vmem>>, vector<256x256xbf16>
    %c640 = arith.constant 640 : index
    %c0_3 = arith.constant 0 : index
    %3 = vector.load %arg2[%c640, %c0_3] : memref<1280x256xbf16, #tpu.memory_space<vmem>>, vector<128x256xbf16>
    %c768 = arith.constant 768 : index
    %c0_4 = arith.constant 0 : index
    %4 = vector.load %arg2[%c768, %c0_4] : memref<1280x256xbf16, #tpu.memory_space<vmem>>, vector<256x256xbf16>
    %c1024 = arith.constant 1024 : index
    %c0_5 = arith.constant 0 : index
    %5 = vector.load %arg2[%c1024, %c0_5] : memref<1280x256xbf16, #tpu.memory_space<vmem>>, vector<256x128xbf16>
    %c0_6 = arith.constant 0 : index
    %c0_7 = arith.constant 0 : index
    %6 = vector.load %arg3[%c0_6, %c0_7] : memref<10x256xf32, #tpu.memory_space<vmem>>, vector<1x256xf32>
    %c1 = arith.constant 1 : index
    %c0_8 = arith.constant 0 : index
    %7 = vector.load %arg3[%c1, %c0_8] : memref<10x256xf32, #tpu.memory_space<vmem>>, vector<1x256xf32>
    %c2 = arith.constant 2 : index
    %c0_9 = arith.constant 0 : index
    %8 = vector.load %arg3[%c2, %c0_9] : memref<10x256xf32, #tpu.memory_space<vmem>>, vector<1x256xf32>
    %c3 = arith.constant 3 : index
    %c0_10 = arith.constant 0 : index
    %9 = vector.load %arg3[%c3, %c0_10] : memref<10x256xf32, #tpu.memory_space<vmem>>, vector<1x256xf32>
    %c4 = arith.constant 4 : index
    %c0_11 = arith.constant 0 : index
    %10 = vector.load %arg3[%c4, %c0_11] : memref<10x256xf32, #tpu.memory_space<vmem>>, vector<1x256xf32>
    %c5 = arith.constant 5 : index
    %c0_12 = arith.constant 0 : index
    %11 = vector.load %arg3[%c5, %c0_12] : memref<10x256xf32, #tpu.memory_space<vmem>>, vector<1x256xf32>
    %c6 = arith.constant 6 : index
    %c0_13 = arith.constant 0 : index
    %12 = vector.load %arg3[%c6, %c0_13] : memref<10x256xf32, #tpu.memory_space<vmem>>, vector<1x256xf32>
    %c7 = arith.constant 7 : index
    %c0_14 = arith.constant 0 : index
    %13 = vector.load %arg3[%c7, %c0_14] : memref<10x256xf32, #tpu.memory_space<vmem>>, vector<1x256xf32>
    %c8 = arith.constant 8 : index
    %c0_15 = arith.constant 0 : index
    %14 = vector.load %arg3[%c8, %c0_15] : memref<10x256xf32, #tpu.memory_space<vmem>>, vector<1x256xf32>
    %c9 = arith.constant 9 : index
    %c0_16 = arith.constant 0 : index
    %15 = vector.load %arg3[%c9, %c0_16] : memref<10x256xf32, #tpu.memory_space<vmem>>, vector<1x128xf32>
    %c0_17 = arith.constant 0 : index
    %c0_18 = arith.constant 0 : index
    %16 = vector.load %arg0[%c0_17, %c0_18] : memref<8x128xf32, #tpu.memory_space<vmem>>, vector<8x128xf32>
    %17 = arith.truncf %16 : vector<8x128xf32> to vector<8x128xbf16>
    %cst = arith.constant dense<0.000000e+00> : vector<8x256xf32>
    %18 = tpu.matmul %17, %0, %cst {dimension_numbers = #tpu.dot_dimension_numbers<[1], [0], [0], [1], [0, 0, 1, 1], [], []>} : vector<8x128xbf16>, vector<128x256xbf16>, vector<8x256xf32> -> vector<8x256xf32>
    %19 = vector.broadcast %6 : vector<1x256xf32> to vector<8x256xf32>
    %20 = arith.addf %18, %19 : vector<8x256xf32>
    %cst_19 = arith.constant dense<0.000000e+00> : vector<256xf32>
    %21 = vector.multi_reduction <add>, %20, %cst_19 [0] : vector<8x256xf32> to vector<256xf32>
    %22 = vector.shape_cast %21 : vector<256xf32> to vector<1x256xf32>
    %cst_20 = arith.constant 8.000000e+00 : f32
    %23 = vector.broadcast %cst_20 : f32 to vector<1x256xf32>
    %24 = arith.divf %22, %23 : vector<1x256xf32>
    %25 = vector.broadcast %24 : vector<1x256xf32> to vector<8x256xf32>
    %26 = arith.subf %20, %25 : vector<8x256xf32>
    %27 = arith.mulf %26, %26 : vector<8x256xf32>
    %cst_21 = arith.constant dense<0.000000e+00> : vector<256xf32>
    %28 = vector.multi_reduction <add>, %27, %cst_21 [0] : vector<8x256xf32> to vector<256xf32>
    %29 = vector.shape_cast %28 : vector<256xf32> to vector<1x256xf32>
    %cst_22 = arith.constant 8.000000e+00 : f32
    %30 = vector.broadcast %cst_22 : f32 to vector<1x256xf32>
    %31 = arith.divf %29, %30 : vector<1x256xf32>
    %32 = vector.broadcast %7 : vector<1x256xf32> to vector<8x256xf32>
    %33 = arith.mulf %32, %26 : vector<8x256xf32>
    %cst_23 = arith.constant 9.99999974E-6 : f32
    %34 = vector.broadcast %cst_23 : f32 to vector<1x256xf32>
    %35 = arith.addf %31, %34 : vector<1x256xf32>
    %36 = math.rsqrt %35 : vector<1x256xf32>
    %37 = vector.broadcast %36 : vector<1x256xf32> to vector<8x256xf32>
    %38 = arith.mulf %33, %37 : vector<8x256xf32>
    %39 = vector.broadcast %8 : vector<1x256xf32> to vector<8x256xf32>
    %40 = arith.addf %38, %39 : vector<8x256xf32>
    %cst_24 = arith.constant 0.000000e+00 : f32
    %41 = vector.broadcast %cst_24 : f32 to vector<8x256xf32>
    %42 = arith.maximumf %40, %41 : vector<8x256xf32>
    %43 = arith.truncf %42 : vector<8x256xf32> to vector<8x256xbf16>
    %cst_25 = arith.constant dense<0.000000e+00> : vector<8x256xf32>
    %44 = tpu.matmul %43, %1, %cst_25 {dimension_numbers = #tpu.dot_dimension_numbers<[1], [0], [0], [1], [0, 0, 1, 1], [], []>} : vector<8x256xbf16>, vector<256x256xbf16>, vector<8x256xf32> -> vector<8x256xf32>
    %45 = vector.broadcast %9 : vector<1x256xf32> to vector<8x256xf32>
    %46 = arith.addf %44, %45 : vector<8x256xf32>
    %cst_26 = arith.constant dense<0.000000e+00> : vector<256xf32>
    %47 = vector.multi_reduction <add>, %46, %cst_26 [0] : vector<8x256xf32> to vector<256xf32>
    %48 = vector.shape_cast %47 : vector<256xf32> to vector<1x256xf32>
    %cst_27 = arith.constant 8.000000e+00 : f32
    %49 = vector.broadcast %cst_27 : f32 to vector<1x256xf32>
    %50 = arith.divf %48, %49 : vector<1x256xf32>
    %51 = vector.broadcast %50 : vector<1x256xf32> to vector<8x256xf32>
    %52 = arith.subf %46, %51 : vector<8x256xf32>
    %53 = arith.mulf %52, %52 : vector<8x256xf32>
    %cst_28 = arith.constant dense<0.000000e+00> : vector<256xf32>
    %54 = vector.multi_reduction <add>, %53, %cst_28 [0] : vector<8x256xf32> to vector<256xf32>
    %55 = vector.shape_cast %54 : vector<256xf32> to vector<1x256xf32>
    %cst_29 = arith.constant 8.000000e+00 : f32
    %56 = vector.broadcast %cst_29 : f32 to vector<1x256xf32>
    %57 = arith.divf %55, %56 : vector<1x256xf32>
    %58 = vector.broadcast %10 : vector<1x256xf32> to vector<8x256xf32>
    %59 = arith.mulf %58, %52 : vector<8x256xf32>
    %cst_30 = arith.constant 9.99999974E-6 : f32
    %60 = vector.broadcast %cst_30 : f32 to vector<1x256xf32>
    %61 = arith.addf %57, %60 : vector<1x256xf32>
    %62 = math.rsqrt %61 : vector<1x256xf32>
    %63 = vector.broadcast %62 : vector<1x256xf32> to vector<8x256xf32>
    %64 = arith.mulf %59, %63 : vector<8x256xf32>
    %65 = vector.broadcast %11 : vector<1x256xf32> to vector<8x256xf32>
    %66 = arith.addf %64, %65 : vector<8x256xf32>
    %cst_31 = arith.constant 0.000000e+00 : f32
    %67 = vector.broadcast %cst_31 : f32 to vector<8x256xf32>
    %68 = arith.maximumf %66, %67 : vector<8x256xf32>
    %69 = arith.truncf %68 : vector<8x256xf32> to vector<8x256xbf16>
    %cst_32 = arith.constant dense<0.000000e+00> : vector<8x256xf32>
    %70 = tpu.matmul %69, %2, %cst_32 {dimension_numbers = #tpu.dot_dimension_numbers<[1], [0], [0], [1], [0, 0, 1, 1], [], []>} : vector<8x256xbf16>, vector<256x256xbf16>, vector<8x256xf32> -> vector<8x256xf32>
    %71 = vector.broadcast %12 : vector<1x256xf32> to vector<8x256xf32>
    %72 = arith.addf %70, %71 : vector<8x256xf32>
    %73 = vector.extract_strided_slice %72 {offsets = [0, 0], sizes = [8, 128], strides = [1, 1]} : vector<8x256xf32> to vector<8x128xf32>
    %74 = vector.extract_strided_slice %72 {offsets = [0, 128], sizes = [8, 128], strides = [1, 1]} : vector<8x256xf32> to vector<8x128xf32>
    %cst_33 = arith.constant 5.000000e-01 : f32
    %75 = vector.broadcast %cst_33 : f32 to vector<8x128xf32>
    %76 = arith.mulf %75, %74 : vector<8x128xf32>
    %77 = math.exp %76 : vector<8x128xf32>
    %c0_34 = arith.constant 0 : index
    %c0_35 = arith.constant 0 : index
    %78 = vector.load %arg1[%c0_34, %c0_35] : memref<8x128xf32, #tpu.memory_space<vmem>>, vector<8x128xf32>
    %79 = arith.mulf %78, %77 : vector<8x128xf32>
    %80 = arith.addf %73, %79 : vector<8x128xf32>
    %cst_36 = arith.constant 1.000000e+00 : f32
    %81 = vector.broadcast %cst_36 : f32 to vector<8x128xf32>
    %82 = arith.addf %81, %74 : vector<8x128xf32>
    %83 = arith.mulf %73, %73 : vector<8x128xf32>
    %84 = arith.subf %82, %83 : vector<8x128xf32>
    %85 = arith.mulf %77, %77 : vector<8x128xf32>
    %86 = arith.subf %84, %85 : vector<8x128xf32>
    %87 = vector.shape_cast %86 : vector<8x128xf32> to vector<1x8x128xf32>
    %cst_37 = arith.constant dense<0.000000e+00> : vector<1xf32>
    %88 = vector.multi_reduction <add>, %87, %cst_37 [1, 2] : vector<1x8x128xf32> to vector<1xf32>
    %89 = vector.shape_cast %88 : vector<1xf32> to vector<1x1x1xf32>
    %90 = vector.extract %89[0, 0, 0] : f32 from vector<1x1x1xf32>
    %cst_38 = arith.constant -6.250000e-02 : f32
    %91 = arith.mulf %cst_38, %90 : f32
    %c0_39 = arith.constant 0 : index
    %c0_40 = arith.constant 0 : index
    %92 = memref.load %arg5[%c0_39, %c0_40] : memref<1x1xf32, #tpu.memory_space<smem>>
    memref.store %91, %arg5[%c0_39, %c0_40] : memref<1x1xf32, #tpu.memory_space<smem>>
    %93 = arith.truncf %80 : vector<8x128xf32> to vector<8x128xbf16>
    %cst_41 = arith.constant dense<0.000000e+00> : vector<8x256xf32>
    %94 = tpu.matmul %93, %3, %cst_41 {dimension_numbers = #tpu.dot_dimension_numbers<[1], [0], [0], [1], [0, 0, 1, 1], [], []>} : vector<8x128xbf16>, vector<128x256xbf16>, vector<8x256xf32> -> vector<8x256xf32>
    %95 = vector.broadcast %13 : vector<1x256xf32> to vector<8x256xf32>
    %96 = arith.addf %94, %95 : vector<8x256xf32>
    %cst_42 = arith.constant 0.000000e+00 : f32
    %97 = vector.broadcast %cst_42 : f32 to vector<8x256xf32>
    %98 = arith.maximumf %96, %97 : vector<8x256xf32>
    %99 = arith.truncf %98 : vector<8x256xf32> to vector<8x256xbf16>
    %cst_43 = arith.constant dense<0.000000e+00> : vector<8x256xf32>
    %100 = tpu.matmul %99, %4, %cst_43 {dimension_numbers = #tpu.dot_dimension_numbers<[1], [0], [0], [1], [0, 0, 1, 1], [], []>} : vector<8x256xbf16>, vector<256x256xbf16>, vector<8x256xf32> -> vector<8x256xf32>
    %101 = vector.broadcast %14 : vector<1x256xf32> to vector<8x256xf32>
    %102 = arith.addf %100, %101 : vector<8x256xf32>
    %cst_44 = arith.constant 0.000000e+00 : f32
    %103 = vector.broadcast %cst_44 : f32 to vector<8x256xf32>
    %104 = arith.maximumf %102, %103 : vector<8x256xf32>
    %105 = arith.truncf %104 : vector<8x256xf32> to vector<8x256xbf16>
    %cst_45 = arith.constant dense<0.000000e+00> : vector<8x128xf32>
    %106 = tpu.matmul %105, %5, %cst_45 {dimension_numbers = #tpu.dot_dimension_numbers<[1], [0], [0], [1], [0, 0, 1, 1], [], []>} : vector<8x256xbf16>, vector<256x128xbf16>, vector<8x128xf32> -> vector<8x128xf32>
    %107 = vector.broadcast %15 : vector<1x128xf32> to vector<8x128xf32>
    %108 = arith.addf %106, %107 : vector<8x128xf32>
    %c0_46 = arith.constant 0 : index
    %c0_47 = arith.constant 0 : index
    %109 = vector.load %arg4[%c0_46, %c0_47] : memref<8x128xf32, #tpu.memory_space<vmem>>, vector<8x128xf32>
    tpu.vector_store %arg4[%c0_46, %c0_47], %108 {strides = array<i32>} : memref<8x128xf32, #tpu.memory_space<vmem>>, vector<8x128xf32>,
    return
  }
}

</mosaic_0001>

<llo_original>
// kernel: tpu_custom_call.1
$region0: #{tpu_custom_call.1}
  #allocation0 [shape = 'u32[]', space=smem, size = 0x4, offset = 0x4, fixed_abs, tag = 'smem constant byte address 0x4 - core index']
  #allocation1 [shape = 'u32[72,128]{1,0:T(1,128)}', space=vmem, size = 0x9000, scoped, tag = 'internal scratch']
  %s0 = inlined_call_operand.hbm [shape: f32[8,128], index: 0, kind: input, shape index: {}]
  %s1 = inlined_call_operand.hbm [shape: f32[8,128], index: 1, kind: input, shape index: {}]
  %s2 = inlined_call_operand.hbm [shape: bf16[1280,256], index: 2, kind: input, shape index: {}]
  %s3 = inlined_call_operand.hbm [shape: f32[10,256], index: 3, kind: input, shape index: {}]
  %s4 = inlined_call_operand.hbm [shape: f32[8,128], index: 4, kind: output, shape index: {0}]
  %s5 = inlined_call_operand.hbm [shape: f32[1,1], index: 5, kind: output, shape index: {1}]
  %6 = xla_tuple %s4, %s5
  %s7 = sld [smem:[#allocation0]]
  $region50: #{tpu_custom_call.1} parent=0
    _
  %s9 = ssub.s32 1, %s7
  %s10 = scalar_select 0, %s9, %s7
  $region1: #{tpu_custom_call.1} parent=0
    #allocation2 [shape = 'u8[4096]{0}', space=vmem, size = 0x1000, scoped, tag = 'input window, operand 0, single buffered']
    #allocation3 [shape = 's32[1]{0}', space=sflag, size = 0x4, scoped, tag = 'scoped memory for tpu_custom_call.1']
    #allocation4 [shape = 's32[1]{0}', space=sflag, size = 0x4, scoped, tag = 'scoped memory for tpu_custom_call.1']
    #allocation5 [shape = 's32[1]{0}', space=sflag, size = 0x4, scoped, tag = 'scoped memory for tpu_custom_call.1']
    #allocation6 [shape = 'u8[4096]{0}', space=vmem, size = 0x1000, scoped, tag = 'input window, operand 1, single buffered']
    #allocation7 [shape = 's32[1]{0}', space=sflag, size = 0x4, scoped, tag = 'scoped memory for tpu_custom_call.1']
    #allocation8 [shape = 'u8[655360]{0}', space=vmem, size = 0xa0000, scoped, tag = 'input window, operand 2, single buffered']
    #allocation9 [shape = 'u8[16384]{0}', space=vmem, size = 0x4000, scoped, tag = 'input window, operand 3, single buffered']
    #allocation10 [shape = 's32[1]{0}', space=sflag, size = 0x4, scoped, tag = 'scoped memory for tpu_custom_call.1']
    #allocation11 [shape = 'u8[4096]{0}', space=vmem, size = 0x1000, scoped, tag = 'output window, operand 0, single buffered']
    #allocation12 [shape = 'u8[512]{0}', space=smem, size = 0x200, scoped, tag = 'output window, operand 1, single buffered']
    %11 = vsyncpa [#allocation3], 0
    %12 = vsyncpa [#allocation7], 0
    %13 = vsyncpa [#allocation10], 0
    %14 = vsyncpa [#allocation4], 0
    %15 = vsyncpa [#allocation5], 0
    // Predicated region
    $region2: #{tpu_custom_call.1} parent=1 // pred_check
      _
    $region3: #{tpu_custom_call.1} parent=1 // pred_check_branch
      %17 = sbr.rel (0) target = $region5
    $region4: #{tpu_custom_call.1} parent=1 // pred_region
      %19 = vsyncadd [#allocation3], 0
      %s21 = sshll.u32 %s0, 4
      %s22 = int_to_ptr.hbm [resolvable:$true] %s21
      %s23 = sshll.u32 [#allocation2], 4
      %s24 = int_to_ptr.vmem [resolvable:$true] %s23
      %26 = dma.hbm_to_vmem [thread:$0]  %s22, 128, %s24, [#allocation3]
    $region5: #{tpu_custom_call.1} parent=1 // pred_fallthru
      _
    // Predicated region
    $region6: #{tpu_custom_call.1} parent=1 // pred_check
      _
    $region7: #{tpu_custom_call.1} parent=1 // pred_check_branch
      %28 = sbr.rel (0) target = $region9
    $region8: #{tpu_custom_call.1} parent=1 // pred_region
      %30 = vsyncadd [#allocation7], 0
      %s32 = sshll.u32 %s1, 4
      %s33 = int_to_ptr.hbm [resolvable:$true] %s32
      %s34 = sshll.u32 [#allocation6], 4
      %s35 = int_to_ptr.vmem [resolvable:$true] %s34
      %37 = dma.hbm_to_vmem [thread:$0]  %s33, 128, %s35, [#allocation7]
    $region9: #{tpu_custom_call.1} parent=1 // pred_fallthru
      _
    // Predicated region
    $region10: #{tpu_custom_call.1} parent=1 // pred_check
      _
    $region11: #{tpu_custom_call.1} parent=1 // pred_check_branch
      %39 = sbr.rel (0) target = $region13
    $region12: #{tpu_custom_call.1} parent=1 // pred_region
      %41 = vsyncadd [#allocation7], 0
      %s42 = sshll.u32 %s2, 4
      %s43 = int_to_ptr.hbm [resolvable:$true] %s42
      %s44 = sshll.u32 [#allocation8], 4
      %s45 = int_to_ptr.vmem [resolvable:$true] %s44
      %50 = dma.hbm_to_vmem [thread:$0]  %s43, 20480, %s45, [#allocation7], 128, 128, 8
    $region13: #{tpu_custom_call.1} parent=1 // pred_fallthru
      _
    // Predicated region
    $region14: #{tpu_custom_call.1} parent=1 // pred_check
      _
    $region15: #{tpu_custom_call.1} parent=1 // pred_check_branch
      %52 = sbr.rel (0) target = $region17
    $region16: #{tpu_custom_call.1} parent=1 // pred_region
      %54 = vsyncadd [#allocation10], 0
      %s55 = sshll.u32 %s3, 4
      %s56 = int_to_ptr.hbm [resolvable:$true] %s55
      %s57 = sshll.u32 [#allocation9], 4
      %s58 = int_to_ptr.vmem [resolvable:$true] %s57
      %63 = dma.hbm_to_vmem [thread:$0]  %s56, 512, %s58, [#allocation10], 256, 256, 16
    $region17: #{tpu_custom_call.1} parent=1 // pred_fallthru
      _
    // Predicated region
    $region18: #{tpu_custom_call.1} parent=1 // pred_check
      _
    $region19: #{tpu_custom_call.1} parent=1 // pred_check_branch
      %65 = sbr.rel (0) target = $region21
    $region20: #{tpu_custom_call.1} parent=1 // pred_region
      %67 = dma.done [#allocation3], 128
    $region21: #{tpu_custom_call.1} parent=1 // pred_fallthru
      _
    // Predicated region
    $region22: #{tpu_custom_call.1} parent=1 // pred_check
      _
    $region23: #{tpu_custom_call.1} parent=1 // pred_check_branch
      %69 = sbr.rel (0) target = $region25
    $region24: #{tpu_custom_call.1} parent=1 // pred_region
      %71 = dma.done [#allocation7], 128
    $region25: #{tpu_custom_call.1} parent=1 // pred_fallthru
      _
    // Predicated region
    $region26: #{tpu_custom_call.1} parent=1 // pred_check
      _
    $region27: #{tpu_custom_call.1} parent=1 // pred_check_branch
      %73 = sbr.rel (0) target = $region29
    $region28: #{tpu_custom_call.1} parent=1 // pred_region
      %75 = dma.done [#allocation7], 20480
    $region29: #{tpu_custom_call.1} parent=1 // pred_fallthru
      _
    // Predicated region
    $region30: #{tpu_custom_call.1} parent=1 // pred_check
      _
    $region31: #{tpu_custom_call.1} parent=1 // pred_check_branch
      %77 = sbr.rel (0) target = $region33
    $region32: #{tpu_custom_call.1} parent=1 // pred_region
      %79 = dma.done [#allocation10], 512
    $region33: #{tpu_custom_call.1} parent=1 // pred_fallthru
      _
    %v80 = vld [vmem:[#allocation8] sm:$0xff]
    %v81 = vld [vmem:[#allocation8 + $0x8] sm:$0xff]
    %v82 = vld [vmem:[#allocation8 + $0x10] sm:$0xff]
    %v83 = vld [vmem:[#allocation8 + $0x18] sm:$0xff]
    %v84 = vld [vmem:[#allocation8 + $0x20] sm:$0xff]
    %v85 = vld [vmem:[#allocation8 + $0x28] sm:$0xff]
    %v86 = vld [vmem:[#allocation8 + $0x30] sm:$0xff]
    %v87 = vld [vmem:[#allocation8 + $0x38] sm:$0xff]
    %v88 = vld [vmem:[#allocation8 + $0x40] sm:$0xff]
    %v89 = vld [vmem:[#allocation8 + $0x48] sm:$0xff]
    %v90 = vld [vmem:[#allocation8 + $0x50] sm:$0xff]
    %v91 = vld [vmem:[#allocation8 + $0x58] sm:$0xff]
    %v92 = vld [vmem:[#allocation8 + $0x60] sm:$0xff]
    %v93 = vld [vmem:[#allocation8 + $0x68] sm:$0xff]
    %v94 = vld [vmem:[#allocation8 + $0x70] sm:$0xff]
    %v95 = vld [vmem:[#allocation8 + $0x78] sm:$0xff]
    %v96 = vld [vmem:[#allocation8 + $0x80] sm:$0xff]
    %v97 = vld [vmem:[#allocation8 + $0x88] sm:$0xff]
    %v98 = vld [vmem:[#allocation8 + $0x90] sm:$0xff]
    %v99 = vld [vmem:[#allocation8 + $0x98] sm:$0xff]
    %v100 = vld [vmem:[#allocation8 + $0xa0] sm:$0xff]
    %v101 = vld [vmem:[#allocation8 + $0xa8] sm:$0xff]
    %v102 = vld [vmem:[#allocation8 + $0xb0] sm:$0xff]
    %v103 = vld [vmem:[#allocation8 + $0xb8] sm:$0xff]
    %v104 = vld [vmem:[#allocation8 + $0xc0] sm:$0xff]
    %v105 = vld [vmem:[#allocation8 + $0xc8] sm:$0xff]
    %v106 = vld [vmem:[#allocation8 + $0xd0] sm:$0xff]
    %v107 = vld [vmem:[#allocation8 + $0xd8] sm:$0xff]
    %v108 = vld [vmem:[#allocation8 + $0xe0] sm:$0xff]
    %v109 = vld [vmem:[#allocation8 + $0xe8] sm:$0xff]
    %v110 = vld [vmem:[#allocation8 + $0xf0] sm:$0xff]
    %v111 = vld [vmem:[#allocation8 + $0xf8] sm:$0xff]
    %v112 = vld [vmem:[#allocation8 + $0x100] sm:$0xff]
    %v113 = vld [vmem:[#allocation8 + $0x108] sm:$0xff]
    %v114 = vld [vmem:[#allocation8 + $0x110] sm:$0xff]
    %v115 = vld [vmem:[#allocation8 + $0x118] sm:$0xff]
    %v116 = vld [vmem:[#allocation8 + $0x120] sm:$0xff]
    %v117 = vld [vmem:[#allocation8 + $0x128] sm:$0xff]
    %v118 = vld [vmem:[#allocation8 + $0x130] sm:$0xff]
    %v119 = vld [vmem:[#allocation8 + $0x138] sm:$0xff]
    %v120 = vld [vmem:[#allocation8 + $0x140] sm:$0xff]
    %v121 = vld [vmem:[#allocation8 + $0x148] sm:$0xff]
    %v122 = vld [vmem:[#allocation8 + $0x150] sm:$0xff]
    %v123 = vld [vmem:[#allocation8 + $0x158] sm:$0xff]
    %v124 = vld [vmem:[#allocation8 + $0x160] sm:$0xff]
    %v125 = vld [vmem:[#allocation8 + $0x168] sm:$0xff]
    %v126 = vld [vmem:[#allocation8 + $0x170] sm:$0xff]
    %v127 = vld [vmem:[#allocation8 + $0x178] sm:$0xff]
    %v128 = vld [vmem:[#allocation8 + $0x180] sm:$0xff]
    %v129 = vld [vmem:[#allocation8 + $0x188] sm:$0xff]
    %v130 = vld [vmem:[#allocation8 + $0x190] sm:$0xff]
    %v131 = vld [vmem:[#allocation8 + $0x198] sm:$0xff]
    %v132 = vld [vmem:[#allocation8 + $0x1a0] sm:$0xff]
    %v133 = vld [vmem:[#allocation8 + $0x1a8] sm:$0xff]
    %v134 = vld [vmem:[#allocation8 + $0x1b0] sm:$0xff]
    %v135 = vld [vmem:[#allocation8 + $0x1b8] sm:$0xff]
    %v136 = vld [vmem:[#allocation8 + $0x1c0] sm:$0xff]
    %v137 = vld [vmem:[#allocation8 + $0x1c8] sm:$0xff]
    %v138 = vld [vmem:[#allocation8 + $0x1d0] sm:$0xff]
    %v139 = vld [vmem:[#allocation8 + $0x1d8] sm:$0xff]
    %v140 = vld [vmem:[#allocation8 + $0x1e0] sm:$0xff]
    %v141 = vld [vmem:[#allocation8 + $0x1e8] sm:$0xff]
    %v142 = vld [vmem:[#allocation8 + $0x1f0] sm:$0xff]
    %v143 = vld [vmem:[#allocation8 + $0x1f8] sm:$0xff]
    %v144 = vld [vmem:[#allocation8 + $0x200] sm:$0xff]
    %v145 = vld [vmem:[#allocation8 + $0x208] sm:$0xff]
    %v146 = vld [vmem:[#allocation8 + $0x210] sm:$0xff]
    %v147 = vld [vmem:[#allocation8 + $0x218] sm:$0xff]
    %v148 = vld [vmem:[#allocation8 + $0x220] sm:$0xff]
    %v149 = vld [vmem:[#allocation8 + $0x228] sm:$0xff]
    %v150 = vld [vmem:[#allocation8 + $0x230] sm:$0xff]
    %v151 = vld [vmem:[#allocation8 + $0x238] sm:$0xff]
    %v152 = vld [vmem:[#allocation8 + $0x240] sm:$0xff]
    %v153 = vld [vmem:[#allocation8 + $0x248] sm:$0xff]
    %v154 = vld [vmem:[#allocation8 + $0x250] sm:$0xff]
    %v155 = vld [vmem:[#allocation8 + $0x258] sm:$0xff]
    %v156 = vld [vmem:[#allocation8 + $0x260] sm:$0xff]
    %v157 = vld [vmem:[#allocation8 + $0x268] sm:$0xff]
    %v158 = vld [vmem:[#allocation8 + $0x270] sm:$0xff]
    %v159 = vld [vmem:[#allocation8 + $0x278] sm:$0xff]
    %v160 = vld [vmem:[#allocation8 + $0x280] sm:$0xff]
    %v161 = vld [vmem:[#allocation8 + $0x288] sm:$0xff]
    %v162 = vld [vmem:[#allocation8 + $0x290] sm:$0xff]
    %v163 = vld [vmem:[#allocation8 + $0x298] sm:$0xff]
    %v164 = vld [vmem:[#allocation8 + $0x2a0] sm:$0xff]
    %v165 = vld [vmem:[#allocation8 + $0x2a8] sm:$0xff]
    %v166 = vld [vmem:[#allocation8 + $0x2b0] sm:$0xff]
    %v167 = vld [vmem:[#allocation8 + $0x2b8] sm:$0xff]
    %v168 = vld [vmem:[#allocation8 + $0x2c0] sm:$0xff]
    %v169 = vld [vmem:[#allocation8 + $0x2c8] sm:$0xff]
    %v170 = vld [vmem:[#allocation8 + $0x2d0] sm:$0xff]
    %v171 = vld [vmem:[#allocation8 + $0x2d8] sm:$0xff]
    %v172 = vld [vmem:[#allocation8 + $0x2e0] sm:$0xff]
    %v173 = vld [vmem:[#allocation8 + $0x2e8] sm:$0xff]
    %v174 = vld [vmem:[#allocation8 + $0x2f0] sm:$0xff]
    %v175 = vld [vmem:[#allocation8 + $0x2f8] sm:$0xff]
    %v176 = vld [vmem:[#allocation8 + $0x300] sm:$0xff]
    %v177 = vld [vmem:[#allocation8 + $0x308] sm:$0xff]
    %v178 = vld [vmem:[#allocation8 + $0x310] sm:$0xff]
    %v179 = vld [vmem:[#allocation8 + $0x318] sm:$0xff]
    %v180 = vld [vmem:[#allocation8 + $0x320] sm:$0xff]
    %v181 = vld [vmem:[#allocation8 + $0x328] sm:$0xff]
    %v182 = vld [vmem:[#allocation8 + $0x330] sm:$0xff]
    %v183 = vld [vmem:[#allocation8 + $0x338] sm:$0xff]
    %v184 = vld [vmem:[#allocation8 + $0x340] sm:$0xff]
    %v185 = vld [vmem:[#allocation8 + $0x348] sm:$0xff]
    %v186 = vld [vmem:[#allocation8 + $0x350] sm:$0xff]
    %v187 = vld [vmem:[#allocation8 + $0x358] sm:$0xff]
    %v188 = vld [vmem:[#allocation8 + $0x360] sm:$0xff]
    %v189 = vld [vmem:[#allocation8 + $0x368] sm:$0xff]
    %v190 = vld [vmem:[#allocation8 + $0x370] sm:$0xff]
    %v191 = vld [vmem:[#allocation8 + $0x378] sm:$0xff]
    %v192 = vld [vmem:[#allocation8 + $0x380] sm:$0xff]
    %v193 = vld [vmem:[#allocation8 + $0x388] sm:$0xff]
    %v194 = vld [vmem:[#allocation8 + $0x390] sm:$0xff]
    %v195 = vld [vmem:[#allocation8 + $0x398] sm:$0xff]
    %v196 = vld [vmem:[#allocation8 + $0x3a0] sm:$0xff]
    %v197 = vld [vmem:[#allocation8 + $0x3a8] sm:$0xff]
    %v198 = vld [vmem:[#allocation8 + $0x3b0] sm:$0xff]
    %v199 = vld [vmem:[#allocation8 + $0x3b8] sm:$0xff]
    %v200 = vld [vmem:[#allocation8 + $0x3c0] sm:$0xff]
    %v201 = vld [vmem:[#allocation8 + $0x3c8] sm:$0xff]
    %v202 = vld [vmem:[#allocation8 + $0x3d0] sm:$0xff]
    %v203 = vld [vmem:[#allocation8 + $0x3d8] sm:$0xff]
    %v204 = vld [vmem:[#allocation8 + $0x3e0] sm:$0xff]
    %v205 = vld [vmem:[#allocation8 + $0x3e8] sm:$0xff]
    %v206 = vld [vmem:[#allocation8 + $0x3f0] sm:$0xff]
    %v207 = vld [vmem:[#allocation8 + $0x3f8] sm:$0xff]
    %v208 = vld [vmem:[#allocation8 + $0x400] sm:$0xf]
    %v209 = vld [vmem:[#allocation8 + $0x408] sm:$0xf]
    %v210 = vld [vmem:[#allocation8 + $0x410] sm:$0xf]
    %v211 = vld [vmem:[#allocation8 + $0x418] sm:$0xf]
    %v212 = vld [vmem:[#allocation8 + $0x420] sm:$0xf]
    %v213 = vld [vmem:[#allocation8 + $0x428] sm:$0xf]
    %v214 = vld [vmem:[#allocation8 + $0x430] sm:$0xf]
    %v215 = vld [vmem:[#allocation8 + $0x438] sm:$0xf]
    %v216 = vld [vmem:[#allocation8 + $0x440] sm:$0xf]
    %v217 = vld [vmem:[#allocation8 + $0x448] sm:$0xf]
    %v218 = vld [vmem:[#allocation8 + $0x450] sm:$0xf]
    %v219 = vld [vmem:[#allocation8 + $0x458] sm:$0xf]
    %v220 = vld [vmem:[#allocation8 + $0x460] sm:$0xf]
    %v221 = vld [vmem:[#allocation8 + $0x468] sm:$0xf]
    %v222 = vld [vmem:[#allocation8 + $0x470] sm:$0xf]
    %v223 = vld [vmem:[#allocation8 + $0x478] sm:$0xf]
    %v224 = vld [vmem:[#allocation8 + $0x480] sm:$0xf]
    %v225 = vld [vmem:[#allocation8 + $0x488] sm:$0xf]
    %v226 = vld [vmem:[#allocation8 + $0x490] sm:$0xf]
    %v227 = vld [vmem:[#allocation8 + $0x498] sm:$0xf]
    %v228 = vld [vmem:[#allocation8 + $0x4a0] sm:$0xf]
    %v229 = vld [vmem:[#allocation8 + $0x4a8] sm:$0xf]
    %v230 = vld [vmem:[#allocation8 + $0x4b0] sm:$0xf]
    %v231 = vld [vmem:[#allocation8 + $0x4b8] sm:$0xf]
    %v232 = vld [vmem:[#allocation8 + $0x4c0] sm:$0xf]
    %v233 = vld [vmem:[#allocation8 + $0x4c8] sm:$0xf]
    %v234 = vld [vmem:[#allocation8 + $0x4d0] sm:$0xf]
    %v235 = vld [vmem:[#allocation8 + $0x4d8] sm:$0xf]
    %v236 = vld [vmem:[#allocation8 + $0x4e0] sm:$0xf]
    %v237 = vld [vmem:[#allocation8 + $0x4e8] sm:$0xf]
    %v238 = vld [vmem:[#allocation8 + $0x4f0] sm:$0xf]
    %v239 = vld [vmem:[#allocation8 + $0x4f8] sm:$0xf]
    %v240 = vld [vmem:[#allocation9] ss:$8 sm:$0x3]
    %s241 = scalar_lea.vmem [#allocation9], 1
    %v242 = vld [vmem:[%s241] ss:$8 sm:$0x3]
    %s243 = scalar_lea.vmem [#allocation9], 2
    %v244 = vld [vmem:[%s243] ss:$8 sm:$0x3]
    %s245 = scalar_lea.vmem [#allocation9], 3
    %v246 = vld [vmem:[%s245] ss:$8 sm:$0x3]
    %s247 = scalar_lea.vmem [#allocation9], 4
    %v248 = vld [vmem:[%s247] ss:$8 sm:$0x3]
    %s249 = scalar_lea.vmem [#allocation9], 5
    %v250 = vld [vmem:[%s249] ss:$8 sm:$0x3]
    %s251 = scalar_lea.vmem [#allocation9], 6
    %v252 = vld [vmem:[%s251] ss:$8 sm:$0x3]
    %s253 = scalar_lea.vmem [#allocation9], 7
    %v254 = vld [vmem:[%s253] ss:$8 sm:$0x3]
    %s255 = scalar_lea.vmem [#allocation9], 16
    %v256 = vld [vmem:[%s255] ss:$8 sm:$0x3]
    %v257 = vld [vmem:[#allocation9 + $0x11] ss:$0 sm:$0xff]
    %v258 = vld [vmem:[#allocation2] sm:$0xff]
    %v259 = vpack.c.bf16 %v258, %v258
    %v261 = vperm.slane %v240, 0
    %v262 = vperm.slane %v240, 1
    %v281 = vunpack.c.l.b16 %v80
    %v282 = vunpack.c.h.b16 %v80
    %v283 = vunpack.c.l.b16 %v81
    %v284 = vunpack.c.h.b16 %v81
    %v285 = vunpack.c.l.b16 %v82
    %v286 = vunpack.c.h.b16 %v82
    %v287 = vunpack.c.l.b16 %v83
    %v288 = vunpack.c.h.b16 %v83
    %v289 = vunpack.c.l.b16 %v84
    %v290 = vunpack.c.h.b16 %v84
    %v291 = vunpack.c.l.b16 %v85
    %v292 = vunpack.c.h.b16 %v85
    %v293 = vunpack.c.l.b16 %v86
    %v294 = vunpack.c.h.b16 %v86
    %v295 = vunpack.c.l.b16 %v87
    %v296 = vunpack.c.h.b16 %v87
    %v297 = vunpack.c.l.b16 %v88
    %v298 = vunpack.c.h.b16 %v88
    %v299 = vunpack.c.l.b16 %v89
    %v300 = vunpack.c.h.b16 %v89
    %v301 = vunpack.c.l.b16 %v90
    %v302 = vunpack.c.h.b16 %v90
    %v303 = vunpack.c.l.b16 %v91
    %v304 = vunpack.c.h.b16 %v91
    %v305 = vunpack.c.l.b16 %v92
    %v306 = vunpack.c.h.b16 %v92
    %v307 = vunpack.c.l.b16 %v93
    %v308 = vunpack.c.h.b16 %v93
    %v309 = vunpack.c.l.b16 %v94
    %v310 = vunpack.c.h.b16 %v94
    %v311 = vunpack.c.l.b16 %v95
    %v312 = vunpack.c.h.b16 %v95
    %v313 = vpack.c.b16 %v283, %v281
    %v314 = vpack.c.b16 %v284, %v282
    %v315 = vpack.c.b16 %v287, %v285
    %v316 = vpack.c.b16 %v288, %v286
    %v317 = vpack.c.b16 %v291, %v289
    %v318 = vpack.c.b16 %v292, %v290
    %v319 = vpack.c.b16 %v295, %v293
    %v320 = vpack.c.b16 %v296, %v294
    %v321 = vpack.c.b16 %v299, %v297
    %v322 = vpack.c.b16 %v300, %v298
    %v323 = vpack.c.b16 %v303, %v301
    %v324 = vpack.c.b16 %v304, %v302
    %v325 = vpack.c.b16 %v307, %v305
    %v326 = vpack.c.b16 %v308, %v306
    %v327 = vpack.c.b16 %v311, %v309
    %v328 = vpack.c.b16 %v312, %v310
    %345 = vmatpush.bf16.msra.mxu0 %v327
    %346 = vmatpush.bf16.msra.mxu0 %v325
    %347 = vmatpush.bf16.msra.mxu0 %v323
    %348 = vmatpush.bf16.msra.mxu0 %v321
    %349 = vmatpush.bf16.msra.mxu0 %v319
    %350 = vmatpush.bf16.msra.mxu0 %v317
    %351 = vmatpush.bf16.msra.mxu0 %v315
    %352 = vmatpush.bf16.msra.mxu0 %v313
    %353 = vmatmul.bf16.gmra.mxu0 %v259
    %v354 = vpop.f32.mrf.mxu0
    %v355 = vadd.f32 %v261, %v354
    %v356 = vpop.f32.mrf.mxu0
    %357 = vdwg.mxu0
    %358 = vmatpush.bf16.msra.mxu0 %v328
    %359 = vmatpush.bf16.msra.mxu0 %v326
    %360 = vmatpush.bf16.msra.mxu0 %v324
    %361 = vmatpush.bf16.msra.mxu0 %v322
    %362 = vmatpush.bf16.msra.mxu0 %v320
    %363 = vmatpush.bf16.msra.mxu0 %v318
    %364 = vmatpush.bf16.msra.mxu0 %v316
    %365 = vmatpush.bf16.msra.mxu0 %v314
    %366 = vmatmul.bf16.gmra.mxu0 %v259
    %v367 = vpop.f32.mrf.mxu0
    %v368 = vadd.f32 %v262, %v367
    %v369 = vpop.f32.mrf.mxu0
    %370 = vdwg.mxu0
    %v371 = vrot.slane %v355, 4
    %v372 = vadd.f32 %v355, %v371
    %v373 = vrot.slane %v372, 2
    %v374 = vadd.f32 %v372, %v373
    %v375 = vrot.slane %v374, 1
    %v376 = vadd.f32 %v374, %v375
    %v377 = vrot.slane %v368, 4
    %v378 = vadd.f32 %v368, %v377
    %v379 = vrot.slane %v378, 2
    %v380 = vadd.f32 %v378, %v379
    %v381 = vrot.slane %v380, 1
    %v382 = vadd.f32 %v380, %v381
    %v383 = vrcp.pop 8.0
    %v384 = vmul.f32 8.0, %v383
    %v385 = vsub.f32 1.0, %v384
    %v386 = vmul.f32 %v383, %v385
    %v387 = vadd.f32 %v383, %v386
    %vm388 = vweird.f32 %v383
    %v389 = vsel %vm388, %v383, %v387
    %v390 = vmul.f32 %v376, %v389
    %v391 = vmul.f32 %v382, %v389
    %v392 = vsub.f32 %v355, %v390
    %v393 = vsub.f32 %v368, %v391
    %v394 = vmul.f32 %v392, %v392
    %v395 = vmul.f32 %v393, %v393
    %v396 = vrot.slane %v394, 4
    %v397 = vadd.f32 %v394, %v396
    %v398 = vrot.slane %v397, 2
    %v399 = vadd.f32 %v397, %v398
    %v400 = vrot.slane %v399, 1
    %v401 = vadd.f32 %v399, %v400
    %v402 = vrot.slane %v395, 4
    %v403 = vadd.f32 %v395, %v402
    %v404 = vrot.slane %v403, 2
    %v405 = vadd.f32 %v403, %v404
    %v406 = vrot.slane %v405, 1
    %v407 = vadd.f32 %v405, %v406
    %v408 = vmul.f32 %v401, %v389
    %v409 = vmul.f32 %v407, %v389
    %v411 = vperm.slane %v242, 0
    %v412 = vperm.slane %v242, 1
    %v415 = vmul.f32 %v411, %v392
    %v416 = vmul.f32 %v412, %v393
    %v417 = vadd.f32 %v408, 1e-05
    %v418 = vadd.f32 %v409, 1e-05
    %v419 = vrsqrt.pop %v417
    %v420 = vmul.f32 %v419, %v417
    %v421 = vmul.f32 %v420, %v419
    %v422 = vmul.f32 0.5, %v421
    %v423 = vsub.f32 1.5, %v422
    %v424 = vmul.f32 %v419, %v423
    %vm425 = vweird.f32 %v417
    %vm426 = vweird.f32 %v419
    %vm427 = vmor %vm425, %vm426
    %v428 = vsel %vm427, %v419, %v424
    %v429 = vrsqrt.pop %v418
    %v430 = vmul.f32 %v429, %v418
    %v431 = vmul.f32 %v430, %v429
    %v432 = vmul.f32 0.5, %v431
    %v433 = vsub.f32 1.5, %v432
    %v434 = vmul.f32 %v429, %v433
    %vm435 = vweird.f32 %v418
    %vm436 = vweird.f32 %v429
    %vm437 = vmor %vm435, %vm436
    %v438 = vsel %vm437, %v429, %v434
    %v439 = vmul.f32 %v415, %v428
    %v440 = vmul.f32 %v416, %v438
    %v442 = vperm.slane %v244, 0
    %v443 = vperm.slane %v244, 1
    %v446 = vadd.f32 %v439, %v442
    %v447 = vadd.f32 %v440, %v443
    %v448 = vmax.f32 %v446, 0.0
    %v449 = vmax.f32 %v447, 0.0
    %v450 = vpack.c.bf16 %v448, %v448
    %v451 = vpack.c.bf16 %v449, %v449
    %v453 = vperm.slane %v246, 0
    %v454 = vperm.slane %v246, 1
    %v489 = vunpack.c.l.b16 %v96
    %v490 = vunpack.c.h.b16 %v96
    %v491 = vunpack.c.l.b16 %v97
    %v492 = vunpack.c.h.b16 %v97
    %v493 = vunpack.c.l.b16 %v98
    %v494 = vunpack.c.h.b16 %v98
    %v495 = vunpack.c.l.b16 %v99
    %v496 = vunpack.c.h.b16 %v99
    %v497 = vunpack.c.l.b16 %v100
    %v498 = vunpack.c.h.b16 %v100
    %v499 = vunpack.c.l.b16 %v101
    %v500 = vunpack.c.h.b16 %v101
    %v501 = vunpack.c.l.b16 %v102
    %v502 = vunpack.c.h.b16 %v102
    %v503 = vunpack.c.l.b16 %v103
    %v504 = vunpack.c.h.b16 %v103
    %v505 = vunpack.c.l.b16 %v104
    %v506 = vunpack.c.h.b16 %v104
    %v507 = vunpack.c.l.b16 %v105
    %v508 = vunpack.c.h.b16 %v105
    %v509 = vunpack.c.l.b16 %v106
    %v510 = vunpack.c.h.b16 %v106
    %v511 = vunpack.c.l.b16 %v107
    %v512 = vunpack.c.h.b16 %v107
    %v513 = vunpack.c.l.b16 %v108
    %v514 = vunpack.c.h.b16 %v108
    %v515 = vunpack.c.l.b16 %v109
    %v516 = vunpack.c.h.b16 %v109
    %v517 = vunpack.c.l.b16 %v110
    %v518 = vunpack.c.h.b16 %v110
    %v519 = vunpack.c.l.b16 %v111
    %v520 = vunpack.c.h.b16 %v111
    %v521 = vunpack.c.l.b16 %v112
    %v522 = vunpack.c.h.b16 %v112
    %v523 = vunpack.c.l.b16 %v113
    %v524 = vunpack.c.h.b16 %v113
    %v525 = vunpack.c.l.b16 %v114
    %v526 = vunpack.c.h.b16 %v114
    %v527 = vunpack.c.l.b16 %v115
    %v528 = vunpack.c.h.b16 %v115
    %v529 = vunpack.c.l.b16 %v116
    %v530 = vunpack.c.h.b16 %v116
    %v531 = vunpack.c.l.b16 %v117
    %v532 = vunpack.c.h.b16 %v117
    %v533 = vunpack.c.l.b16 %v118
    %v534 = vunpack.c.h.b16 %v118
    %v535 = vunpack.c.l.b16 %v119
    %v536 = vunpack.c.h.b16 %v119
    %v537 = vunpack.c.l.b16 %v120
    %v538 = vunpack.c.h.b16 %v120
    %v539 = vunpack.c.l.b16 %v121
    %v540 = vunpack.c.h.b16 %v121
    %v541 = vunpack.c.l.b16 %v122
    %v542 = vunpack.c.h.b16 %v122
    %v543 = vunpack.c.l.b16 %v123
    %v544 = vunpack.c.h.b16 %v123
    %v545 = vunpack.c.l.b16 %v124
    %v546 = vunpack.c.h.b16 %v124
    %v547 = vunpack.c.l.b16 %v125
    %v548 = vunpack.c.h.b16 %v125
    %v549 = vunpack.c.l.b16 %v126
    %v550 = vunpack.c.h.b16 %v126
    %v551 = vunpack.c.l.b16 %v127
    %v552 = vunpack.c.h.b16 %v127
    %v553 = vpack.c.b16 %v491, %v489
    %v554 = vpack.c.b16 %v492, %v490
    %v555 = vpack.c.b16 %v495, %v493
    %v556 = vpack.c.b16 %v496, %v494
    %v557 = vpack.c.b16 %v499, %v497
    %v558 = vpack.c.b16 %v500, %v498
    %v559 = vpack.c.b16 %v503, %v501
    %v560 = vpack.c.b16 %v504, %v502
    %v561 = vpack.c.b16 %v507, %v505
    %v562 = vpack.c.b16 %v508, %v506
    %v563 = vpack.c.b16 %v511, %v509
    %v564 = vpack.c.b16 %v512, %v510
    %v565 = vpack.c.b16 %v515, %v513
    %v566 = vpack.c.b16 %v516, %v514
    %v567 = vpack.c.b16 %v519, %v517
    %v568 = vpack.c.b16 %v520, %v518
    %v569 = vpack.c.b16 %v523, %v521
    %v570 = vpack.c.b16 %v524, %v522
    %v571 = vpack.c.b16 %v527, %v525
    %v572 = vpack.c.b16 %v528, %v526
    %v573 = vpack.c.b16 %v531, %v529
    %v574 = vpack.c.b16 %v532, %v530
    %v575 = vpack.c.b16 %v535, %v533
    %v576 = vpack.c.b16 %v536, %v534
    %v577 = vpack.c.b16 %v539, %v537
    %v578 = vpack.c.b16 %v540, %v538
    %v579 = vpack.c.b16 %v543, %v541
    %v580 = vpack.c.b16 %v544, %v542
    %v581 = vpack.c.b16 %v547, %v545
    %v582 = vpack.c.b16 %v548, %v546
    %v583 = vpack.c.b16 %v551, %v549
    %v584 = vpack.c.b16 %v552, %v550
    %617 = vmatpush.bf16.msra.mxu0 %v567
    %618 = vmatpush.bf16.msra.mxu0 %v565
    %619 = vmatpush.bf16.msra.mxu0 %v563
    %620 = vmatpush.bf16.msra.mxu0 %v561
    %621 = vmatpush.bf16.msra.mxu0 %v559
    %622 = vmatpush.bf16.msra.mxu0 %v557
    %623 = vmatpush.bf16.msra.mxu0 %v555
    %624 = vmatpush.bf16.msra.mxu0 %v553
    %625 = vmatmul.bf16.gmra.mxu0 %v450
    %v626 = vpop.f32.mrf.mxu0
    %v627 = vadd.f32 %v453, %v626
    %v628 = vpop.f32.mrf.mxu0
    %629 = vdwg.mxu0
    %630 = vmatpush.bf16.msra.mxu0 %v583
    %631 = vmatpush.bf16.msra.mxu0 %v581
    %632 = vmatpush.bf16.msra.mxu0 %v579
    %633 = vmatpush.bf16.msra.mxu0 %v577
    %634 = vmatpush.bf16.msra.mxu0 %v575
    %635 = vmatpush.bf16.msra.mxu0 %v573
    %636 = vmatpush.bf16.msra.mxu0 %v571
    %637 = vmatpush.bf16.msra.mxu0 %v569
    %638 = vmatmul.bf16.gmra.mxu0 %v451
    %v639 = vpop.f32.mrf.mxu0
    %v640 = vadd.f32 %v627, %v639
    %v641 = vpop.f32.mrf.mxu0
    %642 = vdwg.mxu0
    %643 = vmatpush.bf16.msra.mxu0 %v568
    %644 = vmatpush.bf16.msra.mxu0 %v566
    %645 = vmatpush.bf16.msra.mxu0 %v564
    %646 = vmatpush.bf16.msra.mxu0 %v562
    %647 = vmatpush.bf16.msra.mxu0 %v560
    %648 = vmatpush.bf16.msra.mxu0 %v558
    %649 = vmatpush.bf16.msra.mxu0 %v556
    %650 = vmatpush.bf16.msra.mxu0 %v554
    %651 = vmatmul.bf16.gmra.mxu0 %v450
    %v652 = vpop.f32.mrf.mxu0
    %v653 = vadd.f32 %v454, %v652
    %v654 = vpop.f32.mrf.mxu0
    %655 = vdwg.mxu0
    %656 = vmatpush.bf16.msra.mxu0 %v584
    %657 = vmatpush.bf16.msra.mxu0 %v582
    %658 = vmatpush.bf16.msra.mxu0 %v580
    %659 = vmatpush.bf16.msra.mxu0 %v578
    %660 = vmatpush.bf16.msra.mxu0 %v576
    %661 = vmatpush.bf16.msra.mxu0 %v574
    %662 = vmatpush.bf16.msra.mxu0 %v572
    %663 = vmatpush.bf16.msra.mxu0 %v570
    %664 = vmatmul.bf16.gmra.mxu0 %v451
    %v665 = vpop.f32.mrf.mxu0
    %v666 = vadd.f32 %v653, %v665
    %v667 = vpop.f32.mrf.mxu0
    %668 = vdwg.mxu0
    %v669 = vrot.slane %v640, 4
    %v670 = vadd.f32 %v640, %v669
    %v671 = vrot.slane %v670, 2
    %v672 = vadd.f32 %v670, %v671
    %v673 = vrot.slane %v672, 1
    %v674 = vadd.f32 %v672, %v673
    %v675 = vrot.slane %v666, 4
    %v676 = vadd.f32 %v666, %v675
    %v677 = vrot.slane %v676, 2
    %v678 = vadd.f32 %v676, %v677
    %v679 = vrot.slane %v678, 1
    %v680 = vadd.f32 %v678, %v679
    %v681 = vmul.f32 %v674, %v389
    %v682 = vmul.f32 %v680, %v389
    %v683 = vsub.f32 %v640, %v681
    %v684 = vsub.f32 %v666, %v682
    %v685 = vmul.f32 %v683, %v683
    %v686 = vmul.f32 %v684, %v684
    %v687 = vrot.slane %v685, 4
    %v688 = vadd.f32 %v685, %v687
    %v689 = vrot.slane %v688, 2
    %v690 = vadd.f32 %v688, %v689
    %v691 = vrot.slane %v690, 1
    %v692 = vadd.f32 %v690, %v691
    %v693 = vrot.slane %v686, 4
    %v694 = vadd.f32 %v686, %v693
    %v695 = vrot.slane %v694, 2
    %v696 = vadd.f32 %v694, %v695
    %v697 = vrot.slane %v696, 1
    %v698 = vadd.f32 %v696, %v697
    %v699 = vmul.f32 %v692, %v389
    %v700 = vmul.f32 %v698, %v389
    %v702 = vperm.slane %v248, 0
    %v703 = vperm.slane %v248, 1
    %v706 = vmul.f32 %v702, %v683
    %v707 = vmul.f32 %v703, %v684
    %v708 = vadd.f32 %v699, 1e-05
    %v709 = vadd.f32 %v700, 1e-05
    %v710 = vrsqrt.pop %v708
    %v711 = vmul.f32 %v710, %v708
    %v712 = vmul.f32 %v711, %v710
    %v713 = vmul.f32 0.5, %v712
    %v714 = vsub.f32 1.5, %v713
    %v715 = vmul.f32 %v710, %v714
    %vm716 = vweird.f32 %v708
    %vm717 = vweird.f32 %v710
    %vm718 = vmor %vm716, %vm717
    %v719 = vsel %vm718, %v710, %v715
    %v720 = vrsqrt.pop %v709
    %v721 = vmul.f32 %v720, %v709
    %v722 = vmul.f32 %v721, %v720
    %v723 = vmul.f32 0.5, %v722
    %v724 = vsub.f32 1.5, %v723
    %v725 = vmul.f32 %v720, %v724
    %vm726 = vweird.f32 %v709
    %vm727 = vweird.f32 %v720
    %vm728 = vmor %vm726, %vm727
    %v729 = vsel %vm728, %v720, %v725
    %v730 = vmul.f32 %v706, %v719
    %v731 = vmul.f32 %v707, %v729
    %v733 = vperm.slane %v250, 0
    %v734 = vperm.slane %v250, 1
    %v737 = vadd.f32 %v730, %v733
    %v738 = vadd.f32 %v731, %v734
    %v739 = vmax.f32 %v737, 0.0
    %v740 = vmax.f32 %v738, 0.0
    %v741 = vpack.c.bf16 %v739, %v739
    %v742 = vpack.c.bf16 %v740, %v740
    %v744 = vperm.slane %v252, 0
    %v745 = vperm.slane %v252, 1
    %v780 = vunpack.c.l.b16 %v128
    %v781 = vunpack.c.h.b16 %v128
    %v782 = vunpack.c.l.b16 %v129
    %v783 = vunpack.c.h.b16 %v129
    %v784 = vunpack.c.l.b16 %v130
    %v785 = vunpack.c.h.b16 %v130
    %v786 = vunpack.c.l.b16 %v131
    %v787 = vunpack.c.h.b16 %v131
    %v788 = vunpack.c.l.b16 %v132
    %v789 = vunpack.c.h.b16 %v132
    %v790 = vunpack.c.l.b16 %v133
    %v791 = vunpack.c.h.b16 %v133
    %v792 = vunpack.c.l.b16 %v134
    %v793 = vunpack.c.h.b16 %v134
    %v794 = vunpack.c.l.b16 %v135
    %v795 = vunpack.c.h.b16 %v135
    %v796 = vunpack.c.l.b16 %v136
    %v797 = vunpack.c.h.b16 %v136
    %v798 = vunpack.c.l.b16 %v137
    %v799 = vunpack.c.h.b16 %v137
    %v800 = vunpack.c.l.b16 %v138
    %v801 = vunpack.c.h.b16 %v138
    %v802 = vunpack.c.l.b16 %v139
    %v803 = vunpack.c.h.b16 %v139
    %v804 = vunpack.c.l.b16 %v140
    %v805 = vunpack.c.h.b16 %v140
    %v806 = vunpack.c.l.b16 %v141
    %v807 = vunpack.c.h.b16 %v141
    %v808 = vunpack.c.l.b16 %v142
    %v809 = vunpack.c.h.b16 %v142
    %v810 = vunpack.c.l.b16 %v143
    %v811 = vunpack.c.h.b16 %v143
    %v812 = vunpack.c.l.b16 %v144
    %v813 = vunpack.c.h.b16 %v144
    %v814 = vunpack.c.l.b16 %v145
    %v815 = vunpack.c.h.b16 %v145
    %v816 = vunpack.c.l.b16 %v146
    %v817 = vunpack.c.h.b16 %v146
    %v818 = vunpack.c.l.b16 %v147
    %v819 = vunpack.c.h.b16 %v147
    %v820 = vunpack.c.l.b16 %v148
    %v821 = vunpack.c.h.b16 %v148
    %v822 = vunpack.c.l.b16 %v149
    %v823 = vunpack.c.h.b16 %v149
    %v824 = vunpack.c.l.b16 %v150
    %v825 = vunpack.c.h.b16 %v150
    %v826 = vunpack.c.l.b16 %v151
    %v827 = vunpack.c.h.b16 %v151
    %v828 = vunpack.c.l.b16 %v152
    %v829 = vunpack.c.h.b16 %v152
    %v830 = vunpack.c.l.b16 %v153
    %v831 = vunpack.c.h.b16 %v153
    %v832 = vunpack.c.l.b16 %v154
    %v833 = vunpack.c.h.b16 %v154
    %v834 = vunpack.c.l.b16 %v155
    %v835 = vunpack.c.h.b16 %v155
    %v836 = vunpack.c.l.b16 %v156
    %v837 = vunpack.c.h.b16 %v156
    %v838 = vunpack.c.l.b16 %v157
    %v839 = vunpack.c.h.b16 %v157
    %v840 = vunpack.c.l.b16 %v158
    %v841 = vunpack.c.h.b16 %v158
    %v842 = vunpack.c.l.b16 %v159
    %v843 = vunpack.c.h.b16 %v159
    %v844 = vpack.c.b16 %v782, %v780
    %v845 = vpack.c.b16 %v783, %v781
    %v846 = vpack.c.b16 %v786, %v784
    %v847 = vpack.c.b16 %v787, %v785
    %v848 = vpack.c.b16 %v790, %v788
    %v849 = vpack.c.b16 %v791, %v789
    %v850 = vpack.c.b16 %v794, %v792
    %v851 = vpack.c.b16 %v795, %v793
    %v852 = vpack.c.b16 %v798, %v796
    %v853 = vpack.c.b16 %v799, %v797
    %v854 = vpack.c.b16 %v802, %v800
    %v855 = vpack.c.b16 %v803, %v801
    %v856 = vpack.c.b16 %v806, %v804
    %v857 = vpack.c.b16 %v807, %v805
    %v858 = vpack.c.b16 %v810, %v808
    %v859 = vpack.c.b16 %v811, %v809
    %v860 = vpack.c.b16 %v814, %v812
    %v861 = vpack.c.b16 %v815, %v813
    %v862 = vpack.c.b16 %v818, %v816
    %v863 = vpack.c.b16 %v819, %v817
    %v864 = vpack.c.b16 %v822, %v820
    %v865 = vpack.c.b16 %v823, %v821
    %v866 = vpack.c.b16 %v826, %v824
    %v867 = vpack.c.b16 %v827, %v825
    %v868 = vpack.c.b16 %v830, %v828
    %v869 = vpack.c.b16 %v831, %v829
    %v870 = vpack.c.b16 %v834, %v832
    %v871 = vpack.c.b16 %v835, %v833
    %v872 = vpack.c.b16 %v838, %v836
    %v873 = vpack.c.b16 %v839, %v837
    %v874 = vpack.c.b16 %v842, %v840
    %v875 = vpack.c.b16 %v843, %v841
    %908 = vmatpush.bf16.msra.mxu0 %v858
    %909 = vmatpush.bf16.msra.mxu0 %v856
    %910 = vmatpush.bf16.msra.mxu0 %v854
    %911 = vmatpush.bf16.msra.mxu0 %v852
    %912 = vmatpush.bf16.msra.mxu0 %v850
    %913 = vmatpush.bf16.msra.mxu0 %v848
    %914 = vmatpush.bf16.msra.mxu0 %v846
    %915 = vmatpush.bf16.msra.mxu0 %v844
    %916 = vmatmul.bf16.gmra.mxu0 %v741
    %v917 = vpop.f32.mrf.mxu0
    %v918 = vadd.f32 %v744, %v917
    %v919 = vpop.f32.mrf.mxu0
    %920 = vdwg.mxu0
    %921 = vmatpush.bf16.msra.mxu0 %v874
    %922 = vmatpush.bf16.msra.mxu0 %v872
    %923 = vmatpush.bf16.msra.mxu0 %v870
    %924 = vmatpush.bf16.msra.mxu0 %v868
    %925 = vmatpush.bf16.msra.mxu0 %v866
    %926 = vmatpush.bf16.msra.mxu0 %v864
    %927 = vmatpush.bf16.msra.mxu0 %v862
    %928 = vmatpush.bf16.msra.mxu0 %v860
    %929 = vmatmul.bf16.gmra.mxu0 %v742
    %v930 = vpop.f32.mrf.mxu0
    %v931 = vadd.f32 %v918, %v930
    %v932 = vpop.f32.mrf.mxu0
    %933 = vdwg.mxu0
    %934 = vmatpush.bf16.msra.mxu0 %v859
    %935 = vmatpush.bf16.msra.mxu0 %v857
    %936 = vmatpush.bf16.msra.mxu0 %v855
    %937 = vmatpush.bf16.msra.mxu0 %v853
    %938 = vmatpush.bf16.msra.mxu0 %v851
    %939 = vmatpush.bf16.msra.mxu0 %v849
    %940 = vmatpush.bf16.msra.mxu0 %v847
    %941 = vmatpush.bf16.msra.mxu0 %v845
    %942 = vmatmul.bf16.gmra.mxu0 %v741
    %v943 = vpop.f32.mrf.mxu0
    %v944 = vadd.f32 %v745, %v943
    %v945 = vpop.f32.mrf.mxu0
    %946 = vdwg.mxu0
    %947 = vmatpush.bf16.msra.mxu0 %v875
    %948 = vmatpush.bf16.msra.mxu0 %v873
    %949 = vmatpush.bf16.msra.mxu0 %v871
    %950 = vmatpush.bf16.msra.mxu0 %v869
    %951 = vmatpush.bf16.msra.mxu0 %v867
    %952 = vmatpush.bf16.msra.mxu0 %v865
    %953 = vmatpush.bf16.msra.mxu0 %v863
    %954 = vmatpush.bf16.msra.mxu0 %v861
    %955 = vmatmul.bf16.gmra.mxu0 %v742
    %v956 = vpop.f32.mrf.mxu0
    %v957 = vadd.f32 %v944, %v956
    %v958 = vpop.f32.mrf.mxu0
    %959 = vdwg.mxu0
    %v960 = vmul.f32 %v957, 0.5
    %v961 = vmul.f32 %v960, 1.442695
    %v962 = vpow.pop %v961
    %v963 = vld [vmem:[#allocation6] sm:$0xff]
    %v964 = vmul.f32 %v963, %v962
    %v965 = vadd.f32 %v931, %v964
    %v966 = vadd.f32 %v957, 1.0
    %v967 = vmul.f32 %v931, %v931
    %v968 = vsub.f32 %v966, %v967
    %v969 = vmul.f32 %v962, %v962
    %v970 = vsub.f32 %v968, %v969
    %971 = vadd.xlane.f32.xlu0 %v970
    %v972 = vpop.xlane.xlu0 %971
    %v973 = vrot.slane %v972, 4
    %v974 = vadd.f32 %v972, %v973
    %v975 = vrot.slane %v974, 2
    %v976 = vadd.f32 %v974, %v975
    %v977 = vrot.slane %v976, 1
    %v978 = vadd.f32 %v976, %v977
    %s979 = vtos %v978
    %s980 = smul.f32 %s979, -0.0625
    %s981 = scalar_lea.smem [#allocation12], 0
    %982 = sst [smem:[%s981]] %s980
    %v983 = vpack.c.bf16 %v965, %v965
    %v985 = vperm.slane %v254, 0
    %v986 = vperm.slane %v254, 1
    %v1005 = vunpack.c.l.b16 %v160
    %v1006 = vunpack.c.h.b16 %v160
    %v1007 = vunpack.c.l.b16 %v161
    %v1008 = vunpack.c.h.b16 %v161
    %v1009 = vunpack.c.l.b16 %v162
    %v1010 = vunpack.c.h.b16 %v162
    %v1011 = vunpack.c.l.b16 %v163
    %v1012 = vunpack.c.h.b16 %v163
    %v1013 = vunpack.c.l.b16 %v164
    %v1014 = vunpack.c.h.b16 %v164
    %v1015 = vunpack.c.l.b16 %v165
    %v1016 = vunpack.c.h.b16 %v165
    %v1017 = vunpack.c.l.b16 %v166
    %v1018 = vunpack.c.h.b16 %v166
    %v1019 = vunpack.c.l.b16 %v167
    %v1020 = vunpack.c.h.b16 %v167
    %v1021 = vunpack.c.l.b16 %v168
    %v1022 = vunpack.c.h.b16 %v168
    %v1023 = vunpack.c.l.b16 %v169
    %v1024 = vunpack.c.h.b16 %v169
    %v1025 = vunpack.c.l.b16 %v170
    %v1026 = vunpack.c.h.b16 %v170
    %v1027 = vunpack.c.l.b16 %v171
    %v1028 = vunpack.c.h.b16 %v171
    %v1029 = vunpack.c.l.b16 %v172
    %v1030 = vunpack.c.h.b16 %v172
    %v1031 = vunpack.c.l.b16 %v173
    %v1032 = vunpack.c.h.b16 %v173
    %v1033 = vunpack.c.l.b16 %v174
    %v1034 = vunpack.c.h.b16 %v174
    %v1035 = vunpack.c.l.b16 %v175
    %v1036 = vunpack.c.h.b16 %v175
    %v1037 = vpack.c.b16 %v1007, %v1005
    %v1038 = vpack.c.b16 %v1008, %v1006
    %v1039 = vpack.c.b16 %v1011, %v1009
    %v1040 = vpack.c.b16 %v1012, %v1010
    %v1041 = vpack.c.b16 %v1015, %v1013
    %v1042 = vpack.c.b16 %v1016, %v1014
    %v1043 = vpack.c.b16 %v1019, %v1017
    %v1044 = vpack.c.b16 %v1020, %v1018
    %v1045 = vpack.c.b16 %v1023, %v1021
    %v1046 = vpack.c.b16 %v1024, %v1022
    %v1047 = vpack.c.b16 %v1027, %v1025
    %v1048 = vpack.c.b16 %v1028, %v1026
    %v1049 = vpack.c.b16 %v1031, %v1029
    %v1050 = vpack.c.b16 %v1032, %v1030
    %v1051 = vpack.c.b16 %v1035, %v1033
    %v1052 = vpack.c.b16 %v1036, %v1034
    %1069 = vmatpush.bf16.msra.mxu0 %v1051
    %1070 = vmatpush.bf16.msra.mxu0 %v1049
    %1071 = vmatpush.bf16.msra.mxu0 %v1047
    %1072 = vmatpush.bf16.msra.mxu0 %v1045
    %1073 = vmatpush.bf16.msra.mxu0 %v1043
    %1074 = vmatpush.bf16.msra.mxu0 %v1041
    %1075 = vmatpush.bf16.msra.mxu0 %v1039
    %1076 = vmatpush.bf16.msra.mxu0 %v1037
    %1077 = vmatmul.bf16.gmra.mxu0 %v983
    %v1078 = vpop.f32.mrf.mxu0
    %v1079 = vadd.f32 %v985, %v1078
    %v1080 = vpop.f32.mrf.mxu0
    %1081 = vdwg.mxu0
    %1082 = vmatpush.bf16.msra.mxu0 %v1052
    %1083 = vmatpush.bf16.msra.mxu0 %v1050
    %1084 = vmatpush.bf16.msra.mxu0 %v1048
    %1085 = vmatpush.bf16.msra.mxu0 %v1046
    %1086 = vmatpush.bf16.msra.mxu0 %v1044
    %1087 = vmatpush.bf16.msra.mxu0 %v1042
    %1088 = vmatpush.bf16.msra.mxu0 %v1040
    %1089 = vmatpush.bf16.msra.mxu0 %v1038
    %1090 = vmatmul.bf16.gmra.mxu0 %v983
    %v1091 = vpop.f32.mrf.mxu0
    %v1092 = vadd.f32 %v986, %v1091
    %v1093 = vpop.f32.mrf.mxu0
    %1094 = vdwg.mxu0
    %v1095 = vmax.f32 %v1079, 0.0
    %v1096 = vmax.f32 %v1092, 0.0
    %v1097 = vpack.c.bf16 %v1095, %v1095
    %v1098 = vpack.c.bf16 %v1096, %v1096
    %v1100 = vperm.slane %v256, 0
    %v1101 = vperm.slane %v256, 1
    %v1136 = vunpack.c.l.b16 %v176
    %v1137 = vunpack.c.h.b16 %v176
    %v1138 = vunpack.c.l.b16 %v177
    %v1139 = vunpack.c.h.b16 %v177
    %v1140 = vunpack.c.l.b16 %v178
    %v1141 = vunpack.c.h.b16 %v178
    %v1142 = vunpack.c.l.b16 %v179
    %v1143 = vunpack.c.h.b16 %v179
    %v1144 = vunpack.c.l.b16 %v180
    %v1145 = vunpack.c.h.b16 %v180
    %v1146 = vunpack.c.l.b16 %v181
    %v1147 = vunpack.c.h.b16 %v181
    %v1148 = vunpack.c.l.b16 %v182
    %v1149 = vunpack.c.h.b16 %v182
    %v1150 = vunpack.c.l.b16 %v183
    %v1151 = vunpack.c.h.b16 %v183
    %v1152 = vunpack.c.l.b16 %v184
    %v1153 = vunpack.c.h.b16 %v184
    %v1154 = vunpack.c.l.b16 %v185
    %v1155 = vunpack.c.h.b16 %v185
    %v1156 = vunpack.c.l.b16 %v186
    %v1157 = vunpack.c.h.b16 %v186
    %v1158 = vunpack.c.l.b16 %v187
    %v1159 = vunpack.c.h.b16 %v187
    %v1160 = vunpack.c.l.b16 %v188
    %v1161 = vunpack.c.h.b16 %v188
    %v1162 = vunpack.c.l.b16 %v189
    %v1163 = vunpack.c.h.b16 %v189
    %v1164 = vunpack.c.l.b16 %v190
    %v1165 = vunpack.c.h.b16 %v190
    %v1166 = vunpack.c.l.b16 %v191
    %v1167 = vunpack.c.h.b16 %v191
    %v1168 = vunpack.c.l.b16 %v192
    %v1169 = vunpack.c.h.b16 %v192
    %v1170 = vunpack.c.l.b16 %v193
    %v1171 = vunpack.c.h.b16 %v193
    %v1172 = vunpack.c.l.b16 %v194
    %v1173 = vunpack.c.h.b16 %v194
    %v1174 = vunpack.c.l.b16 %v195
    %v1175 = vunpack.c.h.b16 %v195
    %v1176 = vunpack.c.l.b16 %v196
    %v1177 = vunpack.c.h.b16 %v196
    %v1178 = vunpack.c.l.b16 %v197
    %v1179 = vunpack.c.h.b16 %v197
    %v1180 = vunpack.c.l.b16 %v198
    %v1181 = vunpack.c.h.b16 %v198
    %v1182 = vunpack.c.l.b16 %v199
    %v1183 = vunpack.c.h.b16 %v199
    %v1184 = vunpack.c.l.b16 %v200
    %v1185 = vunpack.c.h.b16 %v200
    %v1186 = vunpack.c.l.b16 %v201
    %v1187 = vunpack.c.h.b16 %v201
    %v1188 = vunpack.c.l.b16 %v202
    %v1189 = vunpack.c.h.b16 %v202
    %v1190 = vunpack.c.l.b16 %v203
    %v1191 = vunpack.c.h.b16 %v203
    %v1192 = vunpack.c.l.b16 %v204
    %v1193 = vunpack.c.h.b16 %v204
    %v1194 = vunpack.c.l.b16 %v205
    %v1195 = vunpack.c.h.b16 %v205
    %v1196 = vunpack.c.l.b16 %v206
    %v1197 = vunpack.c.h.b16 %v206
    %v1198 = vunpack.c.l.b16 %v207
    %v1199 = vunpack.c.h.b16 %v207
    %v1200 = vpack.c.b16 %v1138, %v1136
    %v1201 = vpack.c.b16 %v1139, %v1137
    %v1202 = vpack.c.b16 %v1142, %v1140
    %v1203 = vpack.c.b16 %v1143, %v1141
    %v1204 = vpack.c.b16 %v1146, %v1144
    %v1205 = vpack.c.b16 %v1147, %v1145
    %v1206 = vpack.c.b16 %v1150, %v1148
    %v1207 = vpack.c.b16 %v1151, %v1149
    %v1208 = vpack.c.b16 %v1154, %v1152
    %v1209 = vpack.c.b16 %v1155, %v1153
    %v1210 = vpack.c.b16 %v1158, %v1156
    %v1211 = vpack.c.b16 %v1159, %v1157
    %v1212 = vpack.c.b16 %v1162, %v1160
    %v1213 = vpack.c.b16 %v1163, %v1161
    %v1214 = vpack.c.b16 %v1166, %v1164
    %v1215 = vpack.c.b16 %v1167, %v1165
    %v1216 = vpack.c.b16 %v1170, %v1168
    %v1217 = vpack.c.b16 %v1171, %v1169
    %v1218 = vpack.c.b16 %v1174, %v1172
    %v1219 = vpack.c.b16 %v1175, %v1173
    %v1220 = vpack.c.b16 %v1178, %v1176
    %v1221 = vpack.c.b16 %v1179, %v1177
    %v1222 = vpack.c.b16 %v1182, %v1180
    %v1223 = vpack.c.b16 %v1183, %v1181
    %v1224 = vpack.c.b16 %v1186, %v1184
    %v1225 = vpack.c.b16 %v1187, %v1185
    %v1226 = vpack.c.b16 %v1190, %v1188
    %v1227 = vpack.c.b16 %v1191, %v1189
    %v1228 = vpack.c.b16 %v1194, %v1192
    %v1229 = vpack.c.b16 %v1195, %v1193
    %v1230 = vpack.c.b16 %v1198, %v1196
    %v1231 = vpack.c.b16 %v1199, %v1197
    %1264 = vmatpush.bf16.msra.mxu0 %v1214
    %1265 = vmatpush.bf16.msra.mxu0 %v1212
    %1266 = vmatpush.bf16.msra.mxu0 %v1210
    %1267 = vmatpush.bf16.msra.mxu0 %v1208
    %1268 = vmatpush.bf16.msra.mxu0 %v1206
    %1269 = vmatpush.bf16.msra.mxu0 %v1204
    %1270 = vmatpush.bf16.msra.mxu0 %v1202
    %1271 = vmatpush.bf16.msra.mxu0 %v1200
    %1272 = vmatmul.bf16.gmra.mxu0 %v1097
    %v1273 = vpop.f32.mrf.mxu0
    %v1274 = vadd.f32 %v1100, %v1273
    %v1275 = vpop.f32.mrf.mxu0
    %1276 = vdwg.mxu0
    %1277 = vmatpush.bf16.msra.mxu0 %v1230
    %1278 = vmatpush.bf16.msra.mxu0 %v1228
    %1279 = vmatpush.bf16.msra.mxu0 %v1226
    %1280 = vmatpush.bf16.msra.mxu0 %v1224
    %1281 = vmatpush.bf16.msra.mxu0 %v1222
    %1282 = vmatpush.bf16.msra.mxu0 %v1220
    %1283 = vmatpush.bf16.msra.mxu0 %v1218
    %1284 = vmatpush.bf16.msra.mxu0 %v1216
    %1285 = vmatmul.bf16.gmra.mxu0 %v1098
    %v1286 = vpop.f32.mrf.mxu0
    %v1287 = vadd.f32 %v1274, %v1286
    %v1288 = vpop.f32.mrf.mxu0
    %1289 = vdwg.mxu0
    %1290 = vmatpush.bf16.msra.mxu0 %v1215
    %1291 = vmatpush.bf16.msra.mxu0 %v1213
    %1292 = vmatpush.bf16.msra.mxu0 %v1211
    %1293 = vmatpush.bf16.msra.mxu0 %v1209
    %1294 = vmatpush.bf16.msra.mxu0 %v1207
    %1295 = vmatpush.bf16.msra.mxu0 %v1205
    %1296 = vmatpush.bf16.msra.mxu0 %v1203
    %1297 = vmatpush.bf16.msra.mxu0 %v1201
    %1298 = vmatmul.bf16.gmra.mxu0 %v1097
    %v1299 = vpop.f32.mrf.mxu0
    %v1300 = vadd.f32 %v1101, %v1299
    %v1301 = vpop.f32.mrf.mxu0
    %1302 = vdwg.mxu0
    %1303 = vmatpush.bf16.msra.mxu0 %v1231
    %1304 = vmatpush.bf16.msra.mxu0 %v1229
    %1305 = vmatpush.bf16.msra.mxu0 %v1227
    %1306 = vmatpush.bf16.msra.mxu0 %v1225
    %1307 = vmatpush.bf16.msra.mxu0 %v1223
    %1308 = vmatpush.bf16.msra.mxu0 %v1221
    %1309 = vmatpush.bf16.msra.mxu0 %v1219
    %1310 = vmatpush.bf16.msra.mxu0 %v1217
    %1311 = vmatmul.bf16.gmra.mxu0 %v1098
    %v1312 = vpop.f32.mrf.mxu0
    %v1313 = vadd.f32 %v1300, %v1312
    %v1314 = vpop.f32.mrf.mxu0
    %1315 = vdwg.mxu0
    %v1316 = vmax.f32 %v1287, 0.0
    %v1317 = vmax.f32 %v1313, 0.0
    %v1318 = vpack.c.bf16 %v1316, %v1316
    %v1319 = vpack.c.bf16 %v1317, %v1317
    %v1352 = vunpack.c.l.b16 %v208
    %v1353 = vunpack.c.l.b16 %v209
    %v1354 = vunpack.c.l.b16 %v210
    %v1355 = vunpack.c.l.b16 %v211
    %v1356 = vunpack.c.l.b16 %v212
    %v1357 = vunpack.c.l.b16 %v213
    %v1358 = vunpack.c.l.b16 %v214
    %v1359 = vunpack.c.l.b16 %v215
    %v1360 = vunpack.c.l.b16 %v216
    %v1361 = vunpack.c.l.b16 %v217
    %v1362 = vunpack.c.l.b16 %v218
    %v1363 = vunpack.c.l.b16 %v219
    %v1364 = vunpack.c.l.b16 %v220
    %v1365 = vunpack.c.l.b16 %v221
    %v1366 = vunpack.c.l.b16 %v222
    %v1367 = vunpack.c.l.b16 %v223
    %v1368 = vunpack.c.l.b16 %v224
    %v1369 = vunpack.c.l.b16 %v225
    %v1370 = vunpack.c.l.b16 %v226
    %v1371 = vunpack.c.l.b16 %v227
    %v1372 = vunpack.c.l.b16 %v228
    %v1373 = vunpack.c.l.b16 %v229
    %v1374 = vunpack.c.l.b16 %v230
    %v1375 = vunpack.c.l.b16 %v231
    %v1376 = vunpack.c.l.b16 %v232
    %v1377 = vunpack.c.l.b16 %v233
    %v1378 = vunpack.c.l.b16 %v234
    %v1379 = vunpack.c.l.b16 %v235
    %v1380 = vunpack.c.l.b16 %v236
    %v1381 = vunpack.c.l.b16 %v237
    %v1382 = vunpack.c.l.b16 %v238
    %v1383 = vunpack.c.l.b16 %v239
    %v1384 = vpack.c.b16 %v1353, %v1352
    %v1385 = vpack.c.b16 %v1355, %v1354
    %v1386 = vpack.c.b16 %v1357, %v1356
    %v1387 = vpack.c.b16 %v1359, %v1358
    %v1388 = vpack.c.b16 %v1361, %v1360
    %v1389 = vpack.c.b16 %v1363, %v1362
    %v1390 = vpack.c.b16 %v1365, %v1364
    %v1391 = vpack.c.b16 %v1367, %v1366
    %v1392 = vpack.c.b16 %v1369, %v1368
    %v1393 = vpack.c.b16 %v1371, %v1370
    %v1394 = vpack.c.b16 %v1373, %v1372
    %v1395 = vpack.c.b16 %v1375, %v1374
    %v1396 = vpack.c.b16 %v1377, %v1376
    %v1397 = vpack.c.b16 %v1379, %v1378
    %v1398 = vpack.c.b16 %v1381, %v1380
    %v1399 = vpack.c.b16 %v1383, %v1382
    %1416 = vmatpush.bf16.msra.mxu0 %v1391
    %1417 = vmatpush.bf16.msra.mxu0 %v1390
    %1418 = vmatpush.bf16.msra.mxu0 %v1389
    %1419 = vmatpush.bf16.msra.mxu0 %v1388
    %1420 = vmatpush.bf16.msra.mxu0 %v1387
    %1421 = vmatpush.bf16.msra.mxu0 %v1386
    %1422 = vmatpush.bf16.msra.mxu0 %v1385
    %1423 = vmatpush.bf16.msra.mxu0 %v1384
    %1424 = vmatmul.bf16.gmra.mxu0 %v1318
    %v1425 = vpop.f32.mrf.mxu0
    %v1426 = vadd.f32 %v257, %v1425
    %v1427 = vpop.f32.mrf.mxu0
    %1428 = vdwg.mxu0
    %1429 = vmatpush.bf16.msra.mxu0 %v1399
    %1430 = vmatpush.bf16.msra.mxu0 %v1398
    %1431 = vmatpush.bf16.msra.mxu0 %v1397
    %1432 = vmatpush.bf16.msra.mxu0 %v1396
    %1433 = vmatpush.bf16.msra.mxu0 %v1395
    %1434 = vmatpush.bf16.msra.mxu0 %v1394
    %1435 = vmatpush.bf16.msra.mxu0 %v1393
    %1436 = vmatpush.bf16.msra.mxu0 %v1392
    %1437 = vmatmul.bf16.gmra.mxu0 %v1319
    %v1438 = vpop.f32.mrf.mxu0
    %v1439 = vadd.f32 %v1426, %v1438
    %v1440 = vpop.f32.mrf.mxu0
    %1441 = vdwg.mxu0
    %1442 = vst [vmem:[#allocation11] sm:$0xff] %v1439
    // Predicated region
    $region34: #{tpu_custom_call.1} parent=1 // pred_check
      _
    $region35: #{tpu_custom_call.1} parent=1 // pred_check_branch
      %1444 = sbr.rel (0) target = $region37
    $region36: #{tpu_custom_call.1} parent=1 // pred_region
      %1446 = vsyncadd [#allocation4], 0
      %s1448 = sshll.u32 [#allocation11], 4
      %s1449 = int_to_ptr.vmem [resolvable:$true] %s1448
      %s1450 = sshll.u32 %s4, 4
      %s1451 = int_to_ptr.hbm [resolvable:$true] %s1450
      %1453 = dma.vmem_to_hbm [thread:$0]  %s1449, 128, %s1451, [#allocation4]
    $region37: #{tpu_custom_call.1} parent=1 // pred_fallthru
      _
    // Predicated region
    $region38: #{tpu_custom_call.1} parent=1 // pred_check
      _
    $region39: #{tpu_custom_call.1} parent=1 // pred_check_branch
      %1455 = sbr.rel (0) target = $region41
    $region40: #{tpu_custom_call.1} parent=1 // pred_region
      %1457 = vsyncadd [#allocation5], 0
      %s1459 = sshll.u32 %s5, 4
      %s1460 = int_to_ptr.hbm [resolvable:$true] %s1459
      %1462 = dma.smem_to_hbm [#allocation12], 16, %s1460, [#allocation5]
    $region41: #{tpu_custom_call.1} parent=1 // pred_fallthru
      _
    // Predicated region
    $region42: #{tpu_custom_call.1} parent=1 // pred_check
      _
    $region43: #{tpu_custom_call.1} parent=1 // pred_check_branch
      %1464 = sbr.rel (0) target = $region45
    $region44: #{tpu_custom_call.1} parent=1 // pred_region
      %1466 = dma.done [#allocation4], 128
    $region45: #{tpu_custom_call.1} parent=1 // pred_fallthru
      _
    // Predicated region
    $region46: #{tpu_custom_call.1} parent=1 // pred_check
      _
    $region47: #{tpu_custom_call.1} parent=1 // pred_check_branch
      %1468 = sbr.rel (0) target = $region49
    $region48: #{tpu_custom_call.1} parent=1 // pred_region
      %1470 = dma.done [#allocation5], 16
    $region49: #{tpu_custom_call.1} parent=1 // pred_fallthru
      _
    %1471 = sfence
    %1472 = vsyncpa [#allocation3], 1
    %1473 = vsyncpa [#allocation7], 1
    %1474 = vsyncpa [#allocation10], 1
    %1475 = vsyncpa [#allocation4], 1
    %1476 = vsyncpa [#allocation5], 1

</llo_original>
